<compile_context>
chip_gen: v7x
topology: tpu7x:2x2x1
jax: 0.10.0
libtpu: 0.0.40
codegen_flags: <defaults>
</compile_context>

<pallas_src>
import jax
import jax.numpy as jnp
from jax.experimental import pallas as pl
from jax.experimental.pallas import tpu as pltpu

INPUT_SIZE = 192
LAYER_SIZES = [INPUT_SIZE, 1024, 512, 256, 128, 4]
OUT_PAD = 128            # lane-dense padded width of the final layer output
MAX_SINGLE_TILE = 512    # largest batch handled as a single grid step
MULTI_STEP_TB = 256      # batch tile for large B (multiple of 256 for v6e MXU)


def dqn_kernel(x_ref,
               w1_ref, b1_ref,
               w2_ref, b2_ref,
               w3_ref, b3_ref,
               w4_ref, b4_ref,
               w5_ref, b5_ref,
               o_ref):
    """Fused 5-layer MLP: bf16 MXU matmuls, f32 accumulation, f32 bias+ReLU."""
    def layer(h, w_ref, b_ref, relu):
        y = jnp.dot(h.astype(w_ref.dtype), w_ref[...],
                    preferred_element_type=jnp.float32)
        y = y + b_ref[...]
        return jnp.maximum(y, 0.0) if relu else y

    h = x_ref[...]
    h = layer(h, w1_ref, b1_ref, relu=True)
    h = layer(h, w2_ref, b2_ref, relu=True)
    h = layer(h, w3_ref, b3_ref, relu=True)
    h = layer(h, w4_ref, b4_ref, relu=True)
    o_ref[...] = layer(h, w5_ref, b5_ref, relu=False).astype(o_ref.dtype)


def _round_up(n, m):
    return ((n + m - 1) // m) * m


@jax.jit
def dqn_forward(x, params):
    """x: [B, 192] f32; params: 5x (w bf16 [in,out], b f32 [1,out]) -> [B, 4] f32."""
    B = x.shape[0]

    # Batch tiling (static at trace time).
    B8 = _round_up(B, 8)
    if B8 <= MAX_SINGLE_TILE:
        TB, B_pad = B8, B8
    else:
        TB = MULTI_STEP_TB
        B_pad = _round_up(B, TB)
    if B_pad != B:
        x = jnp.pad(x, ((0, B_pad - B), (0, 0)))

    # Lane-dense final layer: pad the 4 output columns to 128 with zeros.
    w5, b5 = params[4]
    w5p = jnp.pad(w5, ((0, 0), (0, OUT_PAD - w5.shape[1])))
    b5p = jnp.pad(b5, ((0, 0), (0, OUT_PAD - b5.shape[1])))
    flat = []
    for (w, b) in params[:4]:
        flat += [w, b]
    flat += [w5p, b5p]

    # Weights/biases: whole-array VMEM residents (untiled, not double-buffered).
    resident = pl.BlockSpec(memory_space=pltpu.MemorySpace.VMEM)
    in_specs = [pl.BlockSpec((TB, INPUT_SIZE), lambda i: (i, 0))]
    in_specs += [resident] * len(flat)

    out = pl.pallas_call(
        dqn_kernel,
        out_shape=jax.ShapeDtypeStruct((B_pad, OUT_PAD), jnp.float32),
        grid=(B_pad // TB,),
        in_specs=in_specs,
        out_specs=pl.BlockSpec((TB, OUT_PAD), lambda i: (i, 0)),
        compiler_params=pltpu.CompilerParams(
            dimension_semantics=("parallel",),
            vmem_limit_bytes=32 * 1024 * 1024),
    )(x, *flat)

    return out[:B, :LAYER_SIZES[-1]]


def init_params(key):
    """Deterministic params matching nn.Linear shapes (transposed, bf16 weights).

    PyTorch nn.Linear(in, out) has weight [out, in], bias [out]; we keep the
    transposed weight [in, out] (bf16 for native MXU rate) and bias [1, out]
    (f32). Uses PyTorch's default U(-1/sqrt(in), 1/sqrt(in)) init.
    """
    params = []
    for fan_in, fan_out in zip(LAYER_SIZES[:-1], LAYER_SIZES[1:]):
        key, kw, kb = jax.random.split(key, 3)
        bound = 1.0 / float(fan_in) ** 0.5
        w = jax.random.uniform(kw, (fan_in, fan_out), jnp.float32,
                               minval=-bound, maxval=bound).astype(jnp.bfloat16)
        b = jax.random.uniform(kb, (1, fan_out), jnp.float32,
                               minval=-bound, maxval=bound)
        params.append((w, b))
    return params


def dqn_reference(x, params):
    """Pure-JAX reference with identical numerics (bf16 inputs, f32 accumulate)."""
    h = x
    for li, (w, b) in enumerate(params):
        h = jnp.dot(h.astype(jnp.bfloat16), w,
                    preferred_element_type=jnp.float32) + b
        if li < len(params) - 1:
            h = jnp.maximum(h, 0.0)
    return h


if __name__ == "__main__":
    key = jax.random.PRNGKey(0)
    kx, kp = jax.random.split(key)

    batch = 2
    x = jax.random.normal(kx, (batch, INPUT_SIZE), dtype=jnp.float32)
    params = init_params(kp)

    out = jax.block_until_ready(dqn_forward(x, params))
    ref = dqn_reference(x, params)

    assert out.shape == (batch, 4), out.shape
    assert jnp.allclose(out, ref, atol=1e-2, rtol=1e-2), (
        float(jnp.max(jnp.abs(out - ref))))

    print("KERNEL_OK")
</pallas_src>

<mosaic_0001>
module attributes {stable_mosaic.version = 11 : i64} {
  func.func @dqn_kernel(%arg0: i32, %arg1: memref<8x192xf32, #tpu.memory_space<vmem>>, %arg2: memref<192x1024xbf16, #tpu.memory_space<vmem>>, %arg3: memref<1x1024xf32, #tpu.memory_space<vmem>>, %arg4: memref<1024x512xbf16, #tpu.memory_space<vmem>>, %arg5: memref<1x512xf32, #tpu.memory_space<vmem>>, %arg6: memref<512x256xbf16, #tpu.memory_space<vmem>>, %arg7: memref<1x256xf32, #tpu.memory_space<vmem>>, %arg8: memref<256x128xbf16, #tpu.memory_space<vmem>>, %arg9: memref<1x128xf32, #tpu.memory_space<vmem>>, %arg10: memref<128x128xbf16, #tpu.memory_space<vmem>>, %arg11: memref<1x128xf32, #tpu.memory_space<vmem>>, %arg12: memref<8x128xf32, #tpu.memory_space<vmem>>) attributes {dimension_semantics = [#tpu.dimension_semantics<parallel>], iteration_bounds = array<i64: 1>, scalar_prefetch = 0 : i64, scratch_operands = 0 : i64, tpu.core_type = #tpu.core_type<tc>, window_params = [{transform_indices = @transform_0, window_bounds = array<i64: 8, 192>}, {pipeline_mode = #tpu.pipeline_mode<synchronous>, transform_indices = @transform_1, window_bounds = array<i64: 192, 1024>}, {pipeline_mode = #tpu.pipeline_mode<synchronous>, transform_indices = @transform_2, window_bounds = array<i64: 1, 1024>}, {pipeline_mode = #tpu.pipeline_mode<synchronous>, transform_indices = @transform_3, window_bounds = array<i64: 1024, 512>}, {pipeline_mode = #tpu.pipeline_mode<synchronous>, transform_indices = @transform_4, window_bounds = array<i64: 1, 512>}, {pipeline_mode = #tpu.pipeline_mode<synchronous>, transform_indices = @transform_5, window_bounds = array<i64: 512, 256>}, {pipeline_mode = #tpu.pipeline_mode<synchronous>, transform_indices = @transform_6, window_bounds = array<i64: 1, 256>}, {pipeline_mode = #tpu.pipeline_mode<synchronous>, transform_indices = @transform_7, window_bounds = array<i64: 256, 128>}, {pipeline_mode = #tpu.pipeline_mode<synchronous>, transform_indices = @transform_8, window_bounds = array<i64: 1, 128>}, {pipeline_mode = #tpu.pipeline_mode<synchronous>, transform_indices = @transform_9, window_bounds = array<i64: 128, 128>}, {pipeline_mode = #tpu.pipeline_mode<synchronous>, transform_indices = @transform_10, window_bounds = array<i64: 1, 128>}, {transform_indices = @transform_11, window_bounds = array<i64: 8, 128>}]} {
    %c0 = arith.constant 0 : index
    %c0_0 = arith.constant 0 : index
    %0 = vector.load %arg1[%c0, %c0_0] : memref<8x192xf32, #tpu.memory_space<vmem>>, vector<8x192xf32>
    %1 = arith.truncf %0 : vector<8x192xf32> to vector<8x192xbf16>
    %c0_1 = arith.constant 0 : index
    %c0_2 = arith.constant 0 : index
    %2 = vector.load %arg2[%c0_1, %c0_2] : memref<192x1024xbf16, #tpu.memory_space<vmem>>, vector<192x1024xbf16>
    %cst = arith.constant dense<0.000000e+00> : vector<8x1024xf32>
    %3 = tpu.matmul %1, %2, %cst {dimension_numbers = #tpu.dot_dimension_numbers<[1], [0], [0], [1], [0, 0, 1, 1], [], []>} : vector<8x192xbf16>, vector<192x1024xbf16>, vector<8x1024xf32> -> vector<8x1024xf32>
    %c0_3 = arith.constant 0 : index
    %c0_4 = arith.constant 0 : index
    %4 = vector.load %arg3[%c0_3, %c0_4] : memref<1x1024xf32, #tpu.memory_space<vmem>>, vector<1x1024xf32>
    %5 = vector.broadcast %4 : vector<1x1024xf32> to vector<8x1024xf32>
    %6 = arith.addf %3, %5 : vector<8x1024xf32>
    %cst_5 = arith.constant 0.000000e+00 : f32
    %7 = vector.broadcast %cst_5 : f32 to vector<8x1024xf32>
    %8 = arith.maximumf %6, %7 : vector<8x1024xf32>
    %9 = arith.truncf %8 : vector<8x1024xf32> to vector<8x1024xbf16>
    %c0_6 = arith.constant 0 : index
    %c0_7 = arith.constant 0 : index
    %10 = vector.load %arg4[%c0_6, %c0_7] : memref<1024x512xbf16, #tpu.memory_space<vmem>>, vector<1024x512xbf16>
    %cst_8 = arith.constant dense<0.000000e+00> : vector<8x512xf32>
    %11 = tpu.matmul %9, %10, %cst_8 {dimension_numbers = #tpu.dot_dimension_numbers<[1], [0], [0], [1], [0, 0, 1, 1], [], []>} : vector<8x1024xbf16>, vector<1024x512xbf16>, vector<8x512xf32> -> vector<8x512xf32>
    %c0_9 = arith.constant 0 : index
    %c0_10 = arith.constant 0 : index
    %12 = vector.load %arg5[%c0_9, %c0_10] : memref<1x512xf32, #tpu.memory_space<vmem>>, vector<1x512xf32>
    %13 = vector.broadcast %12 : vector<1x512xf32> to vector<8x512xf32>
    %14 = arith.addf %11, %13 : vector<8x512xf32>
    %cst_11 = arith.constant 0.000000e+00 : f32
    %15 = vector.broadcast %cst_11 : f32 to vector<8x512xf32>
    %16 = arith.maximumf %14, %15 : vector<8x512xf32>
    %17 = arith.truncf %16 : vector<8x512xf32> to vector<8x512xbf16>
    %c0_12 = arith.constant 0 : index
    %c0_13 = arith.constant 0 : index
    %18 = vector.load %arg6[%c0_12, %c0_13] : memref<512x256xbf16, #tpu.memory_space<vmem>>, vector<512x256xbf16>
    %cst_14 = arith.constant dense<0.000000e+00> : vector<8x256xf32>
    %19 = tpu.matmul %17, %18, %cst_14 {dimension_numbers = #tpu.dot_dimension_numbers<[1], [0], [0], [1], [0, 0, 1, 1], [], []>} : vector<8x512xbf16>, vector<512x256xbf16>, vector<8x256xf32> -> vector<8x256xf32>
    %c0_15 = arith.constant 0 : index
    %c0_16 = arith.constant 0 : index
    %20 = vector.load %arg7[%c0_15, %c0_16] : memref<1x256xf32, #tpu.memory_space<vmem>>, vector<1x256xf32>
    %21 = vector.broadcast %20 : vector<1x256xf32> to vector<8x256xf32>
    %22 = arith.addf %19, %21 : vector<8x256xf32>
    %cst_17 = arith.constant 0.000000e+00 : f32
    %23 = vector.broadcast %cst_17 : f32 to vector<8x256xf32>
    %24 = arith.maximumf %22, %23 : vector<8x256xf32>
    %25 = arith.truncf %24 : vector<8x256xf32> to vector<8x256xbf16>
    %c0_18 = arith.constant 0 : index
    %c0_19 = arith.constant 0 : index
    %26 = vector.load %arg8[%c0_18, %c0_19] : memref<256x128xbf16, #tpu.memory_space<vmem>>, vector<256x128xbf16>
    %cst_20 = arith.constant dense<0.000000e+00> : vector<8x128xf32>
    %27 = tpu.matmul %25, %26, %cst_20 {dimension_numbers = #tpu.dot_dimension_numbers<[1], [0], [0], [1], [0, 0, 1, 1], [], []>} : vector<8x256xbf16>, vector<256x128xbf16>, vector<8x128xf32> -> vector<8x128xf32>
    %c0_21 = arith.constant 0 : index
    %c0_22 = arith.constant 0 : index
    %28 = vector.load %arg9[%c0_21, %c0_22] : memref<1x128xf32, #tpu.memory_space<vmem>>, vector<1x128xf32>
    %29 = vector.broadcast %28 : vector<1x128xf32> to vector<8x128xf32>
    %30 = arith.addf %27, %29 : vector<8x128xf32>
    %cst_23 = arith.constant 0.000000e+00 : f32
    %31 = vector.broadcast %cst_23 : f32 to vector<8x128xf32>
    %32 = arith.maximumf %30, %31 : vector<8x128xf32>
    %33 = arith.truncf %32 : vector<8x128xf32> to vector<8x128xbf16>
    %c0_24 = arith.constant 0 : index
    %c0_25 = arith.constant 0 : index
    %34 = vector.load %arg10[%c0_24, %c0_25] : memref<128x128xbf16, #tpu.memory_space<vmem>>, vector<128x128xbf16>
    %cst_26 = arith.constant dense<0.000000e+00> : vector<8x128xf32>
    %35 = tpu.matmul %33, %34, %cst_26 {dimension_numbers = #tpu.dot_dimension_numbers<[1], [0], [0], [1], [0, 0, 1, 1], [], []>} : vector<8x128xbf16>, vector<128x128xbf16>, vector<8x128xf32> -> vector<8x128xf32>
    %c0_27 = arith.constant 0 : index
    %c0_28 = arith.constant 0 : index
    %36 = vector.load %arg11[%c0_27, %c0_28] : memref<1x128xf32, #tpu.memory_space<vmem>>, vector<1x128xf32>
    %37 = vector.broadcast %36 : vector<1x128xf32> to vector<8x128xf32>
    %38 = arith.addf %35, %37 : vector<8x128xf32>
    %c0_29 = arith.constant 0 : index
    %c0_30 = arith.constant 0 : index
    %39 = vector.load %arg12[%c0_29, %c0_30] : memref<8x128xf32, #tpu.memory_space<vmem>>, vector<8x128xf32>
    tpu.vector_store %arg12[%c0_29, %c0_30], %38 {strides = array<i32>} : memref<8x128xf32, #tpu.memory_space<vmem>>, vector<8x128xf32>,
    return
  }
  func.func @transform_0(%arg0: i32) -> (i32, i32) {
    %c0_i32 = arith.constant 0 : i32
    %c0_i32_0 = arith.constant 0 : i32
    return %arg0, %c0_i32 : i32, i32
  }
  func.func @transform_1(%arg0: i32) -> (i32, i32) {
    %c0_i32 = arith.constant 0 : i32
    %c0_i32_0 = arith.constant 0 : i32
    %c0_i32_1 = arith.constant 0 : i32
    return %c0_i32, %c0_i32_0 : i32, i32
  }
  func.func @transform_2(%arg0: i32) -> (i32, i32) {
    %c0_i32 = arith.constant 0 : i32
    %c0_i32_0 = arith.constant 0 : i32
    %c0_i32_1 = arith.constant 0 : i32
    return %c0_i32, %c0_i32_0 : i32, i32
  }
  func.func @transform_3(%arg0: i32) -> (i32, i32) {
    %c0_i32 = arith.constant 0 : i32
    %c0_i32_0 = arith.constant 0 : i32
    %c0_i32_1 = arith.constant 0 : i32
    return %c0_i32, %c0_i32_0 : i32, i32
  }
  func.func @transform_4(%arg0: i32) -> (i32, i32) {
    %c0_i32 = arith.constant 0 : i32
    %c0_i32_0 = arith.constant 0 : i32
    %c0_i32_1 = arith.constant 0 : i32
    return %c0_i32, %c0_i32_0 : i32, i32
  }
  func.func @transform_5(%arg0: i32) -> (i32, i32) {
    %c0_i32 = arith.constant 0 : i32
    %c0_i32_0 = arith.constant 0 : i32
    %c0_i32_1 = arith.constant 0 : i32
    return %c0_i32, %c0_i32_0 : i32, i32
  }
  func.func @transform_6(%arg0: i32) -> (i32, i32) {
    %c0_i32 = arith.constant 0 : i32
    %c0_i32_0 = arith.constant 0 : i32
    %c0_i32_1 = arith.constant 0 : i32
    return %c0_i32, %c0_i32_0 : i32, i32
  }
  func.func @transform_7(%arg0: i32) -> (i32, i32) {
    %c0_i32 = arith.constant 0 : i32
    %c0_i32_0 = arith.constant 0 : i32
    %c0_i32_1 = arith.constant 0 : i32
    return %c0_i32, %c0_i32_0 : i32, i32
  }
  func.func @transform_8(%arg0: i32) -> (i32, i32) {
    %c0_i32 = arith.constant 0 : i32
    %c0_i32_0 = arith.constant 0 : i32
    %c0_i32_1 = arith.constant 0 : i32
    return %c0_i32, %c0_i32_0 : i32, i32
  }
  func.func @transform_9(%arg0: i32) -> (i32, i32) {
    %c0_i32 = arith.constant 0 : i32
    %c0_i32_0 = arith.constant 0 : i32
    %c0_i32_1 = arith.constant 0 : i32
    return %c0_i32, %c0_i32_0 : i32, i32
  }
  func.func @transform_10(%arg0: i32) -> (i32, i32) {
    %c0_i32 = arith.constant 0 : i32
    %c0_i32_0 = arith.constant 0 : i32
    %c0_i32_1 = arith.constant 0 : i32
    return %c0_i32, %c0_i32_0 : i32, i32
  }
  func.func @transform_11(%arg0: i32) -> (i32, i32) {
    %c0_i32 = arith.constant 0 : i32
    %c0_i32_0 = arith.constant 0 : i32
    return %arg0, %c0_i32 : i32, i32
  }
}

</mosaic_0001>

<llo_original>
// kernel: dqn_forward.1
$region0: #{dqn_forward.1}
  #allocation0 [shape = 'u32[]', space=smem, size = 0x4, offset = 0x4, fixed_abs, tag = 'smem constant byte address 0x4 - core index']
  #allocation1 [shape = 'u32[144,128]{1,0:T(1,128)}', space=vmem, size = 0x12000, scoped, tag = 'internal scratch']
  %s0 = inlined_call_operand.vmem [shape: f32[8,192], index: 0, kind: input, shape index: {}]
  %s1 = inlined_call_operand.hbm [shape: bf16[192,1024], index: 1, kind: input, shape index: {}]
  %s2 = inlined_call_operand.vmem [shape: f32[1,1024], index: 2, kind: input, shape index: {}]
  %s3 = inlined_call_operand.hbm [shape: bf16[1024,512], index: 3, kind: input, shape index: {}]
  %s4 = inlined_call_operand.vmem [shape: f32[1,512], index: 4, kind: input, shape index: {}]
  %s5 = inlined_call_operand.hbm [shape: bf16[512,256], index: 5, kind: input, shape index: {}]
  %s6 = inlined_call_operand.vmem [shape: f32[1,256], index: 6, kind: input, shape index: {}]
  %s7 = inlined_call_operand.vmem [shape: bf16[256,128], index: 7, kind: input, shape index: {}]
  %s8 = inlined_call_operand.vmem [shape: f32[1,128], index: 8, kind: input, shape index: {}]
  %s9 = inlined_call_operand.vmem [shape: bf16[128,128], index: 9, kind: input, shape index: {}]
  %s10 = inlined_call_operand.vmem [shape: f32[1,128], index: 10, kind: input, shape index: {}]
  %s11 = inlined_call_operand.vmem [shape: f32[8,128], index: 11, kind: output, shape index: {}]
  %s12 = sld [smem:[#allocation0]]
  $region66: #{dqn_forward.1} parent=0
    _
  %s14 = ssub.s32 1, %s12
  %s15 = scalar_select 0, %s14, %s12
  $region1: #{dqn_forward.1} parent=0
    #allocation2 [shape = 'u8[393216]{0}', space=vmem, size = 0x60000, scoped, tag = 'input window, operand 1, single buffered']
    #allocation3 [shape = 's32[1]{0}', space=sflag, size = 0x4, scoped, tag = 'scoped memory for dqn_forward.1']
    #allocation4 [shape = 'u8[1048576]{0}', space=vmem, size = 0x100000, scoped, tag = 'input window, operand 3, single buffered']
    #allocation5 [shape = 's32[1]{0}', space=sflag, size = 0x4, scoped, tag = 'scoped memory for dqn_forward.1']
    #allocation6 [shape = 'u8[262144]{0}', space=vmem, size = 0x40000, scoped, tag = 'input window, operand 5, single buffered']
    %16 = vsyncpa [#allocation3], 0
    %17 = vsyncpa [#allocation5], 0
    // Predicated region
    $region2: #{dqn_forward.1} parent=1 // pred_check
      _
    $region3: #{dqn_forward.1} parent=1 // pred_check_branch
      %19 = sbr.rel (0) target = $region5
    $region4: #{dqn_forward.1} parent=1 // pred_region
      _
    $region5: #{dqn_forward.1} parent=1 // pred_fallthru
      _
    // Predicated region
    $region6: #{dqn_forward.1} parent=1 // pred_check
      _
    $region7: #{dqn_forward.1} parent=1 // pred_check_branch
      %21 = sbr.rel (0) target = $region9
    $region8: #{dqn_forward.1} parent=1 // pred_region
      %s23 = ssub.s32 12288, 12288
      %24 = vsyncadd [#allocation3], %s23
      %s25 = sshll.u32 [#allocation2], 4
      %s26 = int_to_ptr.vmem [resolvable:$true] %s25
      %31 = dma.hbm_to_vmem [thread:$0]  %s1, 12288, %s26, [#allocation3], 512, 512, 32
    $region9: #{dqn_forward.1} parent=1 // pred_fallthru
      _
    // Predicated region
    $region10: #{dqn_forward.1} parent=1 // pred_check
      _
    $region11: #{dqn_forward.1} parent=1 // pred_check_branch
      %33 = sbr.rel (0) target = $region13
    $region12: #{dqn_forward.1} parent=1 // pred_region
      _
    $region13: #{dqn_forward.1} parent=1 // pred_fallthru
      _
    // Predicated region
    $region14: #{dqn_forward.1} parent=1 // pred_check
      _
    $region15: #{dqn_forward.1} parent=1 // pred_check_branch
      %35 = sbr.rel (0) target = $region17
    $region16: #{dqn_forward.1} parent=1 // pred_region
      %s37 = ssub.s32 32768, 32768
      %38 = vsyncadd [#allocation5], %s37
      %s39 = sshll.u32 [#allocation4], 4
      %s40 = int_to_ptr.vmem [resolvable:$true] %s39
      %45 = dma.hbm_to_vmem [thread:$0]  %s3, 32768, %s40, [#allocation5], 256, 256, 16
    $region17: #{dqn_forward.1} parent=1 // pred_fallthru
      _
    // Predicated region
    $region18: #{dqn_forward.1} parent=1 // pred_check
      _
    $region19: #{dqn_forward.1} parent=1 // pred_check_branch
      %47 = sbr.rel (0) target = $region21
    $region20: #{dqn_forward.1} parent=1 // pred_region
      _
    $region21: #{dqn_forward.1} parent=1 // pred_fallthru
      _
    // Predicated region
    $region22: #{dqn_forward.1} parent=1 // pred_check
      _
    $region23: #{dqn_forward.1} parent=1 // pred_check_branch
      %49 = sbr.rel (0) target = $region25
    $region24: #{dqn_forward.1} parent=1 // pred_region
      %s51 = ssub.s32 8192, 8192
      %52 = vsyncadd [#allocation5], %s51
      %s53 = sshll.u32 [#allocation6], 4
      %s54 = int_to_ptr.vmem [resolvable:$true] %s53
      %59 = dma.hbm_to_vmem [thread:$0]  %s5, 8192, %s54, [#allocation5], 128, 128, 8
    $region25: #{dqn_forward.1} parent=1 // pred_fallthru
      _
    // Predicated region
    $region26: #{dqn_forward.1} parent=1 // pred_check
      _
    $region27: #{dqn_forward.1} parent=1 // pred_check_branch
      %61 = sbr.rel (0) target = $region29
    $region28: #{dqn_forward.1} parent=1 // pred_region
      _
    $region29: #{dqn_forward.1} parent=1 // pred_fallthru
      _
    // Predicated region
    $region30: #{dqn_forward.1} parent=1 // pred_check
      _
    $region31: #{dqn_forward.1} parent=1 // pred_check_branch
      %63 = sbr.rel (0) target = $region33
    $region32: #{dqn_forward.1} parent=1 // pred_region
      _
    $region33: #{dqn_forward.1} parent=1 // pred_fallthru
      _
    // Predicated region
    $region34: #{dqn_forward.1} parent=1 // pred_check
      _
    $region35: #{dqn_forward.1} parent=1 // pred_check_branch
      %65 = sbr.rel (0) target = $region37
    $region36: #{dqn_forward.1} parent=1 // pred_region
      _
    $region37: #{dqn_forward.1} parent=1 // pred_fallthru
      _
    // Predicated region
    $region38: #{dqn_forward.1} parent=1 // pred_check
      _
    $region39: #{dqn_forward.1} parent=1 // pred_check_branch
      %67 = sbr.rel (0) target = $region41
    $region40: #{dqn_forward.1} parent=1 // pred_region
      _
    $region41: #{dqn_forward.1} parent=1 // pred_fallthru
      _
    // Predicated region
    $region42: #{dqn_forward.1} parent=1 // pred_check
      _
    $region43: #{dqn_forward.1} parent=1 // pred_check_branch
      %69 = sbr.rel (0) target = $region45
    $region44: #{dqn_forward.1} parent=1 // pred_region
      _
    $region45: #{dqn_forward.1} parent=1 // pred_fallthru
      _
    // Predicated region
    $region46: #{dqn_forward.1} parent=1 // pred_check
      _
    $region47: #{dqn_forward.1} parent=1 // pred_check_branch
      %71 = sbr.rel (0) target = $region49
    $region48: #{dqn_forward.1} parent=1 // pred_region
      %72 = dma.done [#allocation3], 12288
    $region49: #{dqn_forward.1} parent=1 // pred_fallthru
      _
    // Predicated region
    $region50: #{dqn_forward.1} parent=1 // pred_check
      _
    $region51: #{dqn_forward.1} parent=1 // pred_check_branch
      %74 = sbr.rel (0) target = $region53
    $region52: #{dqn_forward.1} parent=1 // pred_region
      %75 = dma.done [#allocation5], 32768
    $region53: #{dqn_forward.1} parent=1 // pred_fallthru
      _
    // Predicated region
    $region54: #{dqn_forward.1} parent=1 // pred_check
      _
    $region55: #{dqn_forward.1} parent=1 // pred_check_branch
      %77 = sbr.rel (0) target = $region57
    $region56: #{dqn_forward.1} parent=1 // pred_region
      %78 = dma.done [#allocation5], 8192
    $region57: #{dqn_forward.1} parent=1 // pred_fallthru
      _
    %v80 = vld [vmem:[%s0] sm:$0xff]
    %v81 = vld [vmem:[%s0 + $0x8] sm:$0xff]
    %v82 = vpack.c.bf16 %v80, %v80
    %v83 = vpack.c.bf16 %v81, %v81
    %v84 = vld [vmem:[#allocation2] sm:$0xff]
    %v85 = vld [vmem:[#allocation2 + $0x8] sm:$0xff]
    %v86 = vld [vmem:[#allocation2 + $0x10] sm:$0xff]
    %v87 = vld [vmem:[#allocation2 + $0x18] sm:$0xff]
    %v88 = vld [vmem:[#allocation2 + $0x20] sm:$0xff]
    %v89 = vld [vmem:[#allocation2 + $0x28] sm:$0xff]
    %v90 = vld [vmem:[#allocation2 + $0x30] sm:$0xff]
    %v91 = vld [vmem:[#allocation2 + $0x38] sm:$0xff]
    %v92 = vld [vmem:[#allocation2 + $0x40] sm:$0xff]
    %v93 = vld [vmem:[#allocation2 + $0x48] sm:$0xff]
    %v94 = vld [vmem:[#allocation2 + $0x50] sm:$0xff]
    %v95 = vld [vmem:[#allocation2 + $0x58] sm:$0xff]
    %v96 = vld [vmem:[#allocation2 + $0x60] sm:$0xff]
    %v97 = vld [vmem:[#allocation2 + $0x68] sm:$0xff]
    %v98 = vld [vmem:[#allocation2 + $0x70] sm:$0xff]
    %v99 = vld [vmem:[#allocation2 + $0x78] sm:$0xff]
    %v100 = vld [vmem:[#allocation2 + $0x80] sm:$0xff]
    %v101 = vld [vmem:[#allocation2 + $0x88] sm:$0xff]
    %v102 = vld [vmem:[#allocation2 + $0x90] sm:$0xff]
    %v103 = vld [vmem:[#allocation2 + $0x98] sm:$0xff]
    %v104 = vld [vmem:[#allocation2 + $0xa0] sm:$0xff]
    %v105 = vld [vmem:[#allocation2 + $0xa8] sm:$0xff]
    %v106 = vld [vmem:[#allocation2 + $0xb0] sm:$0xff]
    %v107 = vld [vmem:[#allocation2 + $0xb8] sm:$0xff]
    %v108 = vld [vmem:[#allocation2 + $0xc0] sm:$0xff]
    %v109 = vld [vmem:[#allocation2 + $0xc8] sm:$0xff]
    %v110 = vld [vmem:[#allocation2 + $0xd0] sm:$0xff]
    %v111 = vld [vmem:[#allocation2 + $0xd8] sm:$0xff]
    %v112 = vld [vmem:[#allocation2 + $0xe0] sm:$0xff]
    %v113 = vld [vmem:[#allocation2 + $0xe8] sm:$0xff]
    %v114 = vld [vmem:[#allocation2 + $0xf0] sm:$0xff]
    %v115 = vld [vmem:[#allocation2 + $0xf8] sm:$0xff]
    %v116 = vld [vmem:[#allocation2 + $0x100] sm:$0xff]
    %v117 = vld [vmem:[#allocation2 + $0x108] sm:$0xff]
    %v118 = vld [vmem:[#allocation2 + $0x110] sm:$0xff]
    %v119 = vld [vmem:[#allocation2 + $0x118] sm:$0xff]
    %v120 = vld [vmem:[#allocation2 + $0x120] sm:$0xff]
    %v121 = vld [vmem:[#allocation2 + $0x128] sm:$0xff]
    %v122 = vld [vmem:[#allocation2 + $0x130] sm:$0xff]
    %v123 = vld [vmem:[#allocation2 + $0x138] sm:$0xff]
    %v124 = vld [vmem:[#allocation2 + $0x140] sm:$0xff]
    %v125 = vld [vmem:[#allocation2 + $0x148] sm:$0xff]
    %v126 = vld [vmem:[#allocation2 + $0x150] sm:$0xff]
    %v127 = vld [vmem:[#allocation2 + $0x158] sm:$0xff]
    %v128 = vld [vmem:[#allocation2 + $0x160] sm:$0xff]
    %v129 = vld [vmem:[#allocation2 + $0x168] sm:$0xff]
    %v130 = vld [vmem:[#allocation2 + $0x170] sm:$0xff]
    %v131 = vld [vmem:[#allocation2 + $0x178] sm:$0xff]
    %v132 = vld [vmem:[#allocation2 + $0x180] sm:$0xff]
    %v133 = vld [vmem:[#allocation2 + $0x188] sm:$0xff]
    %v134 = vld [vmem:[#allocation2 + $0x190] sm:$0xff]
    %v135 = vld [vmem:[#allocation2 + $0x198] sm:$0xff]
    %v136 = vld [vmem:[#allocation2 + $0x1a0] sm:$0xff]
    %v137 = vld [vmem:[#allocation2 + $0x1a8] sm:$0xff]
    %v138 = vld [vmem:[#allocation2 + $0x1b0] sm:$0xff]
    %v139 = vld [vmem:[#allocation2 + $0x1b8] sm:$0xff]
    %v140 = vld [vmem:[#allocation2 + $0x1c0] sm:$0xff]
    %v141 = vld [vmem:[#allocation2 + $0x1c8] sm:$0xff]
    %v142 = vld [vmem:[#allocation2 + $0x1d0] sm:$0xff]
    %v143 = vld [vmem:[#allocation2 + $0x1d8] sm:$0xff]
    %v144 = vld [vmem:[#allocation2 + $0x1e0] sm:$0xff]
    %v145 = vld [vmem:[#allocation2 + $0x1e8] sm:$0xff]
    %v146 = vld [vmem:[#allocation2 + $0x1f0] sm:$0xff]
    %v147 = vld [vmem:[#allocation2 + $0x1f8] sm:$0xff]
    %v148 = vld [vmem:[#allocation2 + $0x200] sm:$0xff]
    %v149 = vld [vmem:[#allocation2 + $0x208] sm:$0xff]
    %v150 = vld [vmem:[#allocation2 + $0x210] sm:$0xff]
    %v151 = vld [vmem:[#allocation2 + $0x218] sm:$0xff]
    %v152 = vld [vmem:[#allocation2 + $0x220] sm:$0xff]
    %v153 = vld [vmem:[#allocation2 + $0x228] sm:$0xff]
    %v154 = vld [vmem:[#allocation2 + $0x230] sm:$0xff]
    %v155 = vld [vmem:[#allocation2 + $0x238] sm:$0xff]
    %v156 = vld [vmem:[#allocation2 + $0x240] sm:$0xff]
    %v157 = vld [vmem:[#allocation2 + $0x248] sm:$0xff]
    %v158 = vld [vmem:[#allocation2 + $0x250] sm:$0xff]
    %v159 = vld [vmem:[#allocation2 + $0x258] sm:$0xff]
    %v160 = vld [vmem:[#allocation2 + $0x260] sm:$0xff]
    %v161 = vld [vmem:[#allocation2 + $0x268] sm:$0xff]
    %v162 = vld [vmem:[#allocation2 + $0x270] sm:$0xff]
    %v163 = vld [vmem:[#allocation2 + $0x278] sm:$0xff]
    %v164 = vld [vmem:[#allocation2 + $0x280] sm:$0xff]
    %v165 = vld [vmem:[#allocation2 + $0x288] sm:$0xff]
    %v166 = vld [vmem:[#allocation2 + $0x290] sm:$0xff]
    %v167 = vld [vmem:[#allocation2 + $0x298] sm:$0xff]
    %v168 = vld [vmem:[#allocation2 + $0x2a0] sm:$0xff]
    %v169 = vld [vmem:[#allocation2 + $0x2a8] sm:$0xff]
    %v170 = vld [vmem:[#allocation2 + $0x2b0] sm:$0xff]
    %v171 = vld [vmem:[#allocation2 + $0x2b8] sm:$0xff]
    %v172 = vld [vmem:[#allocation2 + $0x2c0] sm:$0xff]
    %v173 = vld [vmem:[#allocation2 + $0x2c8] sm:$0xff]
    %v174 = vld [vmem:[#allocation2 + $0x2d0] sm:$0xff]
    %v175 = vld [vmem:[#allocation2 + $0x2d8] sm:$0xff]
    %v176 = vld [vmem:[#allocation2 + $0x2e0] sm:$0xff]
    %v177 = vld [vmem:[#allocation2 + $0x2e8] sm:$0xff]
    %v178 = vld [vmem:[#allocation2 + $0x2f0] sm:$0xff]
    %v179 = vld [vmem:[#allocation2 + $0x2f8] sm:$0xff]
    %v180 = vld [vmem:[%s2] sm:$0xff]
    %v182 = vlaneseq
    %v183 = vshrl.u32 %v182, 7
    %v184 = vsub.s32 0, %v183
    %v185 = vrot.slane %v180, %v184
    %v186 = vlaneseq
    %v187 = vshrl.u32 %v186, 7
    %v188 = vsub.s32 1, %v187
    %v189 = vrot.slane %v180, %v188
    %v190 = vlaneseq
    %v191 = vshrl.u32 %v190, 7
    %v192 = vsub.s32 2, %v191
    %v193 = vrot.slane %v180, %v192
    %v194 = vlaneseq
    %v195 = vshrl.u32 %v194, 7
    %v196 = vsub.s32 3, %v195
    %v197 = vrot.slane %v180, %v196
    %v198 = vlaneseq
    %v199 = vshrl.u32 %v198, 7
    %v200 = vsub.s32 4, %v199
    %v201 = vrot.slane %v180, %v200
    %v202 = vlaneseq
    %v203 = vshrl.u32 %v202, 7
    %v204 = vsub.s32 5, %v203
    %v205 = vrot.slane %v180, %v204
    %v206 = vlaneseq
    %v207 = vshrl.u32 %v206, 7
    %v208 = vsub.s32 6, %v207
    %v209 = vrot.slane %v180, %v208
    %v210 = vlaneseq
    %v211 = vshrl.u32 %v210, 7
    %v212 = vsub.s32 7, %v211
    %v213 = vrot.slane %v180, %v212
    %v318 = vunpack.c.l.b16 %v84
    %v319 = vunpack.c.h.b16 %v84
    %v320 = vunpack.c.l.b16 %v85
    %v321 = vunpack.c.h.b16 %v85
    %v322 = vunpack.c.l.b16 %v86
    %v323 = vunpack.c.h.b16 %v86
    %v324 = vunpack.c.l.b16 %v87
    %v325 = vunpack.c.h.b16 %v87
    %v326 = vunpack.c.l.b16 %v88
    %v327 = vunpack.c.h.b16 %v88
    %v328 = vunpack.c.l.b16 %v89
    %v329 = vunpack.c.h.b16 %v89
    %v330 = vunpack.c.l.b16 %v90
    %v331 = vunpack.c.h.b16 %v90
    %v332 = vunpack.c.l.b16 %v91
    %v333 = vunpack.c.h.b16 %v91
    %v334 = vunpack.c.l.b16 %v92
    %v335 = vunpack.c.h.b16 %v92
    %v336 = vunpack.c.l.b16 %v93
    %v337 = vunpack.c.h.b16 %v93
    %v338 = vunpack.c.l.b16 %v94
    %v339 = vunpack.c.h.b16 %v94
    %v340 = vunpack.c.l.b16 %v95
    %v341 = vunpack.c.h.b16 %v95
    %v342 = vunpack.c.l.b16 %v96
    %v343 = vunpack.c.h.b16 %v96
    %v344 = vunpack.c.l.b16 %v97
    %v345 = vunpack.c.h.b16 %v97
    %v346 = vunpack.c.l.b16 %v98
    %v347 = vunpack.c.h.b16 %v98
    %v348 = vunpack.c.l.b16 %v99
    %v349 = vunpack.c.h.b16 %v99
    %v350 = vunpack.c.l.b16 %v100
    %v351 = vunpack.c.h.b16 %v100
    %v352 = vunpack.c.l.b16 %v101
    %v353 = vunpack.c.h.b16 %v101
    %v354 = vunpack.c.l.b16 %v102
    %v355 = vunpack.c.h.b16 %v102
    %v356 = vunpack.c.l.b16 %v103
    %v357 = vunpack.c.h.b16 %v103
    %v358 = vunpack.c.l.b16 %v104
    %v359 = vunpack.c.h.b16 %v104
    %v360 = vunpack.c.l.b16 %v105
    %v361 = vunpack.c.h.b16 %v105
    %v362 = vunpack.c.l.b16 %v106
    %v363 = vunpack.c.h.b16 %v106
    %v364 = vunpack.c.l.b16 %v107
    %v365 = vunpack.c.h.b16 %v107
    %v366 = vunpack.c.l.b16 %v108
    %v367 = vunpack.c.h.b16 %v108
    %v368 = vunpack.c.l.b16 %v109
    %v369 = vunpack.c.h.b16 %v109
    %v370 = vunpack.c.l.b16 %v110
    %v371 = vunpack.c.h.b16 %v110
    %v372 = vunpack.c.l.b16 %v111
    %v373 = vunpack.c.h.b16 %v111
    %v374 = vunpack.c.l.b16 %v112
    %v375 = vunpack.c.h.b16 %v112
    %v376 = vunpack.c.l.b16 %v113
    %v377 = vunpack.c.h.b16 %v113
    %v378 = vunpack.c.l.b16 %v114
    %v379 = vunpack.c.h.b16 %v114
    %v380 = vunpack.c.l.b16 %v115
    %v381 = vunpack.c.h.b16 %v115
    %v382 = vunpack.c.l.b16 %v116
    %v383 = vunpack.c.h.b16 %v116
    %v384 = vunpack.c.l.b16 %v117
    %v385 = vunpack.c.h.b16 %v117
    %v386 = vunpack.c.l.b16 %v118
    %v387 = vunpack.c.h.b16 %v118
    %v388 = vunpack.c.l.b16 %v119
    %v389 = vunpack.c.h.b16 %v119
    %v390 = vunpack.c.l.b16 %v120
    %v391 = vunpack.c.h.b16 %v120
    %v392 = vunpack.c.l.b16 %v121
    %v393 = vunpack.c.h.b16 %v121
    %v394 = vunpack.c.l.b16 %v122
    %v395 = vunpack.c.h.b16 %v122
    %v396 = vunpack.c.l.b16 %v123
    %v397 = vunpack.c.h.b16 %v123
    %v398 = vunpack.c.l.b16 %v124
    %v399 = vunpack.c.h.b16 %v124
    %v400 = vunpack.c.l.b16 %v125
    %v401 = vunpack.c.h.b16 %v125
    %v402 = vunpack.c.l.b16 %v126
    %v403 = vunpack.c.h.b16 %v126
    %v404 = vunpack.c.l.b16 %v127
    %v405 = vunpack.c.h.b16 %v127
    %v406 = vunpack.c.l.b16 %v128
    %v407 = vunpack.c.h.b16 %v128
    %v408 = vunpack.c.l.b16 %v129
    %v409 = vunpack.c.h.b16 %v129
    %v410 = vunpack.c.l.b16 %v130
    %v411 = vunpack.c.h.b16 %v130
    %v412 = vunpack.c.l.b16 %v131
    %v413 = vunpack.c.h.b16 %v131
    %v414 = vunpack.c.l.b16 %v132
    %v415 = vunpack.c.h.b16 %v132
    %v416 = vunpack.c.l.b16 %v133
    %v417 = vunpack.c.h.b16 %v133
    %v418 = vunpack.c.l.b16 %v134
    %v419 = vunpack.c.h.b16 %v134
    %v420 = vunpack.c.l.b16 %v135
    %v421 = vunpack.c.h.b16 %v135
    %v422 = vunpack.c.l.b16 %v136
    %v423 = vunpack.c.h.b16 %v136
    %v424 = vunpack.c.l.b16 %v137
    %v425 = vunpack.c.h.b16 %v137
    %v426 = vunpack.c.l.b16 %v138
    %v427 = vunpack.c.h.b16 %v138
    %v428 = vunpack.c.l.b16 %v139
    %v429 = vunpack.c.h.b16 %v139
    %v430 = vunpack.c.l.b16 %v140
    %v431 = vunpack.c.h.b16 %v140
    %v432 = vunpack.c.l.b16 %v141
    %v433 = vunpack.c.h.b16 %v141
    %v434 = vunpack.c.l.b16 %v142
    %v435 = vunpack.c.h.b16 %v142
    %v436 = vunpack.c.l.b16 %v143
    %v437 = vunpack.c.h.b16 %v143
    %v438 = vunpack.c.l.b16 %v144
    %v439 = vunpack.c.h.b16 %v144
    %v440 = vunpack.c.l.b16 %v145
    %v441 = vunpack.c.h.b16 %v145
    %v442 = vunpack.c.l.b16 %v146
    %v443 = vunpack.c.h.b16 %v146
    %v444 = vunpack.c.l.b16 %v147
    %v445 = vunpack.c.h.b16 %v147
    %v446 = vunpack.c.l.b16 %v148
    %v447 = vunpack.c.h.b16 %v148
    %v448 = vunpack.c.l.b16 %v149
    %v449 = vunpack.c.h.b16 %v149
    %v450 = vunpack.c.l.b16 %v150
    %v451 = vunpack.c.h.b16 %v150
    %v452 = vunpack.c.l.b16 %v151
    %v453 = vunpack.c.h.b16 %v151
    %v454 = vunpack.c.l.b16 %v152
    %v455 = vunpack.c.h.b16 %v152
    %v456 = vunpack.c.l.b16 %v153
    %v457 = vunpack.c.h.b16 %v153
    %v458 = vunpack.c.l.b16 %v154
    %v459 = vunpack.c.h.b16 %v154
    %v460 = vunpack.c.l.b16 %v155
    %v461 = vunpack.c.h.b16 %v155
    %v462 = vunpack.c.l.b16 %v156
    %v463 = vunpack.c.h.b16 %v156
    %v464 = vunpack.c.l.b16 %v157
    %v465 = vunpack.c.h.b16 %v157
    %v466 = vunpack.c.l.b16 %v158
    %v467 = vunpack.c.h.b16 %v158
    %v468 = vunpack.c.l.b16 %v159
    %v469 = vunpack.c.h.b16 %v159
    %v470 = vunpack.c.l.b16 %v160
    %v471 = vunpack.c.h.b16 %v160
    %v472 = vunpack.c.l.b16 %v161
    %v473 = vunpack.c.h.b16 %v161
    %v474 = vunpack.c.l.b16 %v162
    %v475 = vunpack.c.h.b16 %v162
    %v476 = vunpack.c.l.b16 %v163
    %v477 = vunpack.c.h.b16 %v163
    %v478 = vunpack.c.l.b16 %v164
    %v479 = vunpack.c.h.b16 %v164
    %v480 = vunpack.c.l.b16 %v165
    %v481 = vunpack.c.h.b16 %v165
    %v482 = vunpack.c.l.b16 %v166
    %v483 = vunpack.c.h.b16 %v166
    %v484 = vunpack.c.l.b16 %v167
    %v485 = vunpack.c.h.b16 %v167
    %v486 = vunpack.c.l.b16 %v168
    %v487 = vunpack.c.h.b16 %v168
    %v488 = vunpack.c.l.b16 %v169
    %v489 = vunpack.c.h.b16 %v169
    %v490 = vunpack.c.l.b16 %v170
    %v491 = vunpack.c.h.b16 %v170
    %v492 = vunpack.c.l.b16 %v171
    %v493 = vunpack.c.h.b16 %v171
    %v494 = vunpack.c.l.b16 %v172
    %v495 = vunpack.c.h.b16 %v172
    %v496 = vunpack.c.l.b16 %v173
    %v497 = vunpack.c.h.b16 %v173
    %v498 = vunpack.c.l.b16 %v174
    %v499 = vunpack.c.h.b16 %v174
    %v500 = vunpack.c.l.b16 %v175
    %v501 = vunpack.c.h.b16 %v175
    %v502 = vunpack.c.l.b16 %v176
    %v503 = vunpack.c.h.b16 %v176
    %v504 = vunpack.c.l.b16 %v177
    %v505 = vunpack.c.h.b16 %v177
    %v506 = vunpack.c.l.b16 %v178
    %v507 = vunpack.c.h.b16 %v178
    %v508 = vunpack.c.l.b16 %v179
    %v509 = vunpack.c.h.b16 %v179
    %v510 = vpack.c.b16 %v326, %v318
    %v511 = vpack.c.b16 %v327, %v319
    %v512 = vpack.c.b16 %v328, %v320
    %v513 = vpack.c.b16 %v329, %v321
    %v514 = vpack.c.b16 %v330, %v322
    %v515 = vpack.c.b16 %v331, %v323
    %v516 = vpack.c.b16 %v332, %v324
    %v517 = vpack.c.b16 %v333, %v325
    %v518 = vpack.c.b16 %v342, %v334
    %v519 = vpack.c.b16 %v343, %v335
    %v520 = vpack.c.b16 %v344, %v336
    %v521 = vpack.c.b16 %v345, %v337
    %v522 = vpack.c.b16 %v346, %v338
    %v523 = vpack.c.b16 %v347, %v339
    %v524 = vpack.c.b16 %v348, %v340
    %v525 = vpack.c.b16 %v349, %v341
    %v526 = vpack.c.b16 %v358, %v350
    %v527 = vpack.c.b16 %v359, %v351
    %v528 = vpack.c.b16 %v360, %v352
    %v529 = vpack.c.b16 %v361, %v353
    %v530 = vpack.c.b16 %v362, %v354
    %v531 = vpack.c.b16 %v363, %v355
    %v532 = vpack.c.b16 %v364, %v356
    %v533 = vpack.c.b16 %v365, %v357
    %v534 = vpack.c.b16 %v374, %v366
    %v535 = vpack.c.b16 %v375, %v367
    %v536 = vpack.c.b16 %v376, %v368
    %v537 = vpack.c.b16 %v377, %v369
    %v538 = vpack.c.b16 %v378, %v370
    %v539 = vpack.c.b16 %v379, %v371
    %v540 = vpack.c.b16 %v380, %v372
    %v541 = vpack.c.b16 %v381, %v373
    %v542 = vpack.c.b16 %v390, %v382
    %v543 = vpack.c.b16 %v391, %v383
    %v544 = vpack.c.b16 %v392, %v384
    %v545 = vpack.c.b16 %v393, %v385
    %v546 = vpack.c.b16 %v394, %v386
    %v547 = vpack.c.b16 %v395, %v387
    %v548 = vpack.c.b16 %v396, %v388
    %v549 = vpack.c.b16 %v397, %v389
    %v550 = vpack.c.b16 %v406, %v398
    %v551 = vpack.c.b16 %v407, %v399
    %v552 = vpack.c.b16 %v408, %v400
    %v553 = vpack.c.b16 %v409, %v401
    %v554 = vpack.c.b16 %v410, %v402
    %v555 = vpack.c.b16 %v411, %v403
    %v556 = vpack.c.b16 %v412, %v404
    %v557 = vpack.c.b16 %v413, %v405
    %v558 = vpack.c.b16 %v422, %v414
    %v559 = vpack.c.b16 %v423, %v415
    %v560 = vpack.c.b16 %v424, %v416
    %v561 = vpack.c.b16 %v425, %v417
    %v562 = vpack.c.b16 %v426, %v418
    %v563 = vpack.c.b16 %v427, %v419
    %v564 = vpack.c.b16 %v428, %v420
    %v565 = vpack.c.b16 %v429, %v421
    %v566 = vpack.c.b16 %v438, %v430
    %v567 = vpack.c.b16 %v439, %v431
    %v568 = vpack.c.b16 %v440, %v432
    %v569 = vpack.c.b16 %v441, %v433
    %v570 = vpack.c.b16 %v442, %v434
    %v571 = vpack.c.b16 %v443, %v435
    %v572 = vpack.c.b16 %v444, %v436
    %v573 = vpack.c.b16 %v445, %v437
    %v574 = vpack.c.b16 %v454, %v446
    %v575 = vpack.c.b16 %v455, %v447
    %v576 = vpack.c.b16 %v456, %v448
    %v577 = vpack.c.b16 %v457, %v449
    %v578 = vpack.c.b16 %v458, %v450
    %v579 = vpack.c.b16 %v459, %v451
    %v580 = vpack.c.b16 %v460, %v452
    %v581 = vpack.c.b16 %v461, %v453
    %v582 = vpack.c.b16 %v470, %v462
    %v583 = vpack.c.b16 %v471, %v463
    %v584 = vpack.c.b16 %v472, %v464
    %v585 = vpack.c.b16 %v473, %v465
    %v586 = vpack.c.b16 %v474, %v466
    %v587 = vpack.c.b16 %v475, %v467
    %v588 = vpack.c.b16 %v476, %v468
    %v589 = vpack.c.b16 %v477, %v469
    %v590 = vpack.c.b16 %v486, %v478
    %v591 = vpack.c.b16 %v487, %v479
    %v592 = vpack.c.b16 %v488, %v480
    %v593 = vpack.c.b16 %v489, %v481
    %v594 = vpack.c.b16 %v490, %v482
    %v595 = vpack.c.b16 %v491, %v483
    %v596 = vpack.c.b16 %v492, %v484
    %v597 = vpack.c.b16 %v493, %v485
    %v598 = vpack.c.b16 %v502, %v494
    %v599 = vpack.c.b16 %v503, %v495
    %v600 = vpack.c.b16 %v504, %v496
    %v601 = vpack.c.b16 %v505, %v497
    %v602 = vpack.c.b16 %v506, %v498
    %v603 = vpack.c.b16 %v507, %v499
    %v604 = vpack.c.b16 %v508, %v500
    %v605 = vpack.c.b16 %v509, %v501
    %vm702 = vcmask 523264
    %v704 = vsel %vm702, %v83, 0
    %706 = vmatprep.subr.bf16.mxu0 %v511
    %707 = vmatpush1.bf16.msra.mxu0 %v510
    %708 = vmatprep.subr.bf16.mxu0 %v519
    %709 = vmatpush1.bf16.msra.mxu0 %v518
    %710 = vmatprep.subr.bf16.mxu0 %v527
    %711 = vmatpush1.bf16.msra.mxu0 %v526
    %712 = vmatprep.subr.bf16.mxu0 %v535
    %713 = vmatpush1.bf16.msra.mxu0 %v534
    %714 = vmatprep.subr.bf16.mxu0 %v543
    %715 = vmatpush1.bf16.msra.mxu0 %v542
    %716 = vmatprep.subr.bf16.mxu0 %v551
    %717 = vmatpush1.bf16.msra.mxu0 %v550
    %718 = vmatprep.subr.bf16.mxu0 %v559
    %719 = vmatpush1.bf16.msra.mxu0 %v558
    %720 = vmatprep.subr.bf16.mxu0 %v567
    %721 = vmatpush1.bf16.msra.mxu0 %v566
    %722 = vmatprep.subr.bf16.mxu0 %v575
    %723 = vmatpush1.bf16.msra.mxu0 %v574
    %724 = vmatprep.subr.bf16.mxu0 %v583
    %725 = vmatpush1.bf16.msra.mxu0 %v582
    %726 = vmatprep.subr.bf16.mxu0 %v591
    %727 = vmatpush1.bf16.msra.mxu0 %v590
    %728 = vmatprep.subr.bf16.mxu0 %v599
    %729 = vmatpush1.bf16.msra.mxu0 %v598
    %730 = vmatprep.subr.bf16.mxu0 0
    %731 = vmatpush1.bf16.msra.mxu0 0
    %732 = vmatprep.subr.bf16.mxu0 0
    %733 = vmatpush1.bf16.msra.mxu0 0
    %734 = vmatprep.subr.bf16.mxu0 0
    %735 = vmatpush1.bf16.msra.mxu0 0
    %736 = vmatprep.subr.bf16.mxu0 0
    %737 = vmatpush1.bf16.msra.mxu0 0
    %738 = vmatprep.mubr.bf16.mxu0 %v704
    %739 = vmatmul.mubr.bf16.gmra.mrb[0].mxu0 %v82
    %v740 = vpop.f32.mrb[0].mxu0
    %v741 = vadd.f32 %v185, %v740
    %v742 = vpop.f32.mrb[0].mxu0
    %v743 = vadd.f32 %v189, %v742
    %v744 = vpop.f32.mrb[0].mxu0
    %v745 = vpop.f32.mrb[0].mxu0
    %746 = vdwg.mxu0
    %747 = vmatprep.subr.bf16.mxu0 %v513
    %748 = vmatpush1.bf16.msra.mxu0 %v512
    %749 = vmatprep.subr.bf16.mxu0 %v521
    %750 = vmatpush1.bf16.msra.mxu0 %v520
    %751 = vmatprep.subr.bf16.mxu0 %v529
    %752 = vmatpush1.bf16.msra.mxu0 %v528
    %753 = vmatprep.subr.bf16.mxu0 %v537
    %754 = vmatpush1.bf16.msra.mxu0 %v536
    %755 = vmatprep.subr.bf16.mxu0 %v545
    %756 = vmatpush1.bf16.msra.mxu0 %v544
    %757 = vmatprep.subr.bf16.mxu0 %v553
    %758 = vmatpush1.bf16.msra.mxu0 %v552
    %759 = vmatprep.subr.bf16.mxu0 %v561
    %760 = vmatpush1.bf16.msra.mxu0 %v560
    %761 = vmatprep.subr.bf16.mxu0 %v569
    %762 = vmatpush1.bf16.msra.mxu0 %v568
    %763 = vmatprep.subr.bf16.mxu0 %v577
    %764 = vmatpush1.bf16.msra.mxu0 %v576
    %765 = vmatprep.subr.bf16.mxu0 %v585
    %766 = vmatpush1.bf16.msra.mxu0 %v584
    %767 = vmatprep.subr.bf16.mxu0 %v593
    %768 = vmatpush1.bf16.msra.mxu0 %v592
    %769 = vmatprep.subr.bf16.mxu0 %v601
    %770 = vmatpush1.bf16.msra.mxu0 %v600
    %771 = vmatprep.subr.bf16.mxu0 0
    %772 = vmatpush1.bf16.msra.mxu0 0
    %773 = vmatprep.subr.bf16.mxu0 0
    %774 = vmatpush1.bf16.msra.mxu0 0
    %775 = vmatprep.subr.bf16.mxu0 0
    %776 = vmatpush1.bf16.msra.mxu0 0
    %777 = vmatprep.subr.bf16.mxu0 0
    %778 = vmatpush1.bf16.msra.mxu0 0
    %779 = vmatprep.mubr.bf16.mxu0 %v704
    %780 = vmatmul.mubr.bf16.gmra.mrb[0].mxu0 %v82
    %v781 = vpop.f32.mrb[0].mxu0
    %v782 = vadd.f32 %v193, %v781
    %v783 = vpop.f32.mrb[0].mxu0
    %v784 = vadd.f32 %v197, %v783
    %v785 = vpop.f32.mrb[0].mxu0
    %v786 = vpop.f32.mrb[0].mxu0
    %787 = vdwg.mxu0
    %788 = vmatprep.subr.bf16.mxu0 %v515
    %789 = vmatpush1.bf16.msra.mxu0 %v514
    %790 = vmatprep.subr.bf16.mxu0 %v523
    %791 = vmatpush1.bf16.msra.mxu0 %v522
    %792 = vmatprep.subr.bf16.mxu0 %v531
    %793 = vmatpush1.bf16.msra.mxu0 %v530
    %794 = vmatprep.subr.bf16.mxu0 %v539
    %795 = vmatpush1.bf16.msra.mxu0 %v538
    %796 = vmatprep.subr.bf16.mxu0 %v547
    %797 = vmatpush1.bf16.msra.mxu0 %v546
    %798 = vmatprep.subr.bf16.mxu0 %v555
    %799 = vmatpush1.bf16.msra.mxu0 %v554
    %800 = vmatprep.subr.bf16.mxu0 %v563
    %801 = vmatpush1.bf16.msra.mxu0 %v562
    %802 = vmatprep.subr.bf16.mxu0 %v571
    %803 = vmatpush1.bf16.msra.mxu0 %v570
    %804 = vmatprep.subr.bf16.mxu0 %v579
    %805 = vmatpush1.bf16.msra.mxu0 %v578
    %806 = vmatprep.subr.bf16.mxu0 %v587
    %807 = vmatpush1.bf16.msra.mxu0 %v586
    %808 = vmatprep.subr.bf16.mxu0 %v595
    %809 = vmatpush1.bf16.msra.mxu0 %v594
    %810 = vmatprep.subr.bf16.mxu0 %v603
    %811 = vmatpush1.bf16.msra.mxu0 %v602
    %812 = vmatprep.subr.bf16.mxu0 0
    %813 = vmatpush1.bf16.msra.mxu0 0
    %814 = vmatprep.subr.bf16.mxu0 0
    %815 = vmatpush1.bf16.msra.mxu0 0
    %816 = vmatprep.subr.bf16.mxu0 0
    %817 = vmatpush1.bf16.msra.mxu0 0
    %818 = vmatprep.subr.bf16.mxu0 0
    %819 = vmatpush1.bf16.msra.mxu0 0
    %820 = vmatprep.mubr.bf16.mxu0 %v704
    %821 = vmatmul.mubr.bf16.gmra.mrb[0].mxu0 %v82
    %v822 = vpop.f32.mrb[0].mxu0
    %v823 = vadd.f32 %v201, %v822
    %v824 = vpop.f32.mrb[0].mxu0
    %v825 = vadd.f32 %v205, %v824
    %v826 = vpop.f32.mrb[0].mxu0
    %v827 = vpop.f32.mrb[0].mxu0
    %828 = vdwg.mxu0
    %829 = vmatprep.subr.bf16.mxu0 %v517
    %830 = vmatpush1.bf16.msra.mxu0 %v516
    %831 = vmatprep.subr.bf16.mxu0 %v525
    %832 = vmatpush1.bf16.msra.mxu0 %v524
    %833 = vmatprep.subr.bf16.mxu0 %v533
    %834 = vmatpush1.bf16.msra.mxu0 %v532
    %835 = vmatprep.subr.bf16.mxu0 %v541
    %836 = vmatpush1.bf16.msra.mxu0 %v540
    %837 = vmatprep.subr.bf16.mxu0 %v549
    %838 = vmatpush1.bf16.msra.mxu0 %v548
    %839 = vmatprep.subr.bf16.mxu0 %v557
    %840 = vmatpush1.bf16.msra.mxu0 %v556
    %841 = vmatprep.subr.bf16.mxu0 %v565
    %842 = vmatpush1.bf16.msra.mxu0 %v564
    %843 = vmatprep.subr.bf16.mxu0 %v573
    %844 = vmatpush1.bf16.msra.mxu0 %v572
    %845 = vmatprep.subr.bf16.mxu0 %v581
    %846 = vmatpush1.bf16.msra.mxu0 %v580
    %847 = vmatprep.subr.bf16.mxu0 %v589
    %848 = vmatpush1.bf16.msra.mxu0 %v588
    %849 = vmatprep.subr.bf16.mxu0 %v597
    %850 = vmatpush1.bf16.msra.mxu0 %v596
    %851 = vmatprep.subr.bf16.mxu0 %v605
    %852 = vmatpush1.bf16.msra.mxu0 %v604
    %853 = vmatprep.subr.bf16.mxu0 0
    %854 = vmatpush1.bf16.msra.mxu0 0
    %855 = vmatprep.subr.bf16.mxu0 0
    %856 = vmatpush1.bf16.msra.mxu0 0
    %857 = vmatprep.subr.bf16.mxu0 0
    %858 = vmatpush1.bf16.msra.mxu0 0
    %859 = vmatprep.subr.bf16.mxu0 0
    %860 = vmatpush1.bf16.msra.mxu0 0
    %861 = vmatprep.mubr.bf16.mxu0 %v704
    %862 = vmatmul.mubr.bf16.gmra.mrb[0].mxu0 %v82
    %v863 = vpop.f32.mrb[0].mxu0
    %v864 = vadd.f32 %v209, %v863
    %v865 = vpop.f32.mrb[0].mxu0
    %v866 = vadd.f32 %v213, %v865
    %v867 = vpop.f32.mrb[0].mxu0
    %v868 = vpop.f32.mrb[0].mxu0
    %869 = vdwg.mxu0
    %v870 = vmax.f32 %v741, 0.0
    %v871 = vmax.f32 %v743, 0.0
    %v872 = vmax.f32 %v782, 0.0
    %v873 = vmax.f32 %v784, 0.0
    %v874 = vmax.f32 %v823, 0.0
    %v875 = vmax.f32 %v825, 0.0
    %v876 = vmax.f32 %v864, 0.0
    %v877 = vmax.f32 %v866, 0.0
    %v878 = vpack.c.bf16 %v870, %v870
    %v879 = vpack.c.bf16 %v871, %v871
    %v880 = vpack.c.bf16 %v872, %v872
    %v881 = vpack.c.bf16 %v873, %v873
    %v882 = vpack.c.bf16 %v874, %v874
    %v883 = vpack.c.bf16 %v875, %v875
    %v884 = vpack.c.bf16 %v876, %v876
    %v885 = vpack.c.bf16 %v877, %v877
    %v886 = vld [vmem:[#allocation4] sm:$0xff]
    %v887 = vld [vmem:[#allocation4 + $0x8] sm:$0xff]
    %v888 = vld [vmem:[#allocation4 + $0x10] sm:$0xff]
    %v889 = vld [vmem:[#allocation4 + $0x18] sm:$0xff]
    %v890 = vld [vmem:[#allocation4 + $0x20] sm:$0xff]
    %v891 = vld [vmem:[#allocation4 + $0x28] sm:$0xff]
    %v892 = vld [vmem:[#allocation4 + $0x30] sm:$0xff]
    %v893 = vld [vmem:[#allocation4 + $0x38] sm:$0xff]
    %v894 = vld [vmem:[#allocation4 + $0x40] sm:$0xff]
    %v895 = vld [vmem:[#allocation4 + $0x48] sm:$0xff]
    %v896 = vld [vmem:[#allocation4 + $0x50] sm:$0xff]
    %v897 = vld [vmem:[#allocation4 + $0x58] sm:$0xff]
    %v898 = vld [vmem:[#allocation4 + $0x60] sm:$0xff]
    %v899 = vld [vmem:[#allocation4 + $0x68] sm:$0xff]
    %v900 = vld [vmem:[#allocation4 + $0x70] sm:$0xff]
    %v901 = vld [vmem:[#allocation4 + $0x78] sm:$0xff]
    %v902 = vld [vmem:[#allocation4 + $0x80] sm:$0xff]
    %v903 = vld [vmem:[#allocation4 + $0x88] sm:$0xff]
    %v904 = vld [vmem:[#allocation4 + $0x90] sm:$0xff]
    %v905 = vld [vmem:[#allocation4 + $0x98] sm:$0xff]
    %v906 = vld [vmem:[#allocation4 + $0xa0] sm:$0xff]
    %v907 = vld [vmem:[#allocation4 + $0xa8] sm:$0xff]
    %v908 = vld [vmem:[#allocation4 + $0xb0] sm:$0xff]
    %v909 = vld [vmem:[#allocation4 + $0xb8] sm:$0xff]
    %v910 = vld [vmem:[#allocation4 + $0xc0] sm:$0xff]
    %v911 = vld [vmem:[#allocation4 + $0xc8] sm:$0xff]
    %v912 = vld [vmem:[#allocation4 + $0xd0] sm:$0xff]
    %v913 = vld [vmem:[#allocation4 + $0xd8] sm:$0xff]
    %v914 = vld [vmem:[#allocation4 + $0xe0] sm:$0xff]
    %v915 = vld [vmem:[#allocation4 + $0xe8] sm:$0xff]
    %v916 = vld [vmem:[#allocation4 + $0xf0] sm:$0xff]
    %v917 = vld [vmem:[#allocation4 + $0xf8] sm:$0xff]
    %v918 = vld [vmem:[#allocation4 + $0x100] sm:$0xff]
    %v919 = vld [vmem:[#allocation4 + $0x108] sm:$0xff]
    %v920 = vld [vmem:[#allocation4 + $0x110] sm:$0xff]
    %v921 = vld [vmem:[#allocation4 + $0x118] sm:$0xff]
    %v922 = vld [vmem:[#allocation4 + $0x120] sm:$0xff]
    %v923 = vld [vmem:[#allocation4 + $0x128] sm:$0xff]
    %v924 = vld [vmem:[#allocation4 + $0x130] sm:$0xff]
    %v925 = vld [vmem:[#allocation4 + $0x138] sm:$0xff]
    %v926 = vld [vmem:[#allocation4 + $0x140] sm:$0xff]
    %v927 = vld [vmem:[#allocation4 + $0x148] sm:$0xff]
    %v928 = vld [vmem:[#allocation4 + $0x150] sm:$0xff]
    %v929 = vld [vmem:[#allocation4 + $0x158] sm:$0xff]
    %v930 = vld [vmem:[#allocation4 + $0x160] sm:$0xff]
    %v931 = vld [vmem:[#allocation4 + $0x168] sm:$0xff]
    %v932 = vld [vmem:[#allocation4 + $0x170] sm:$0xff]
    %v933 = vld [vmem:[#allocation4 + $0x178] sm:$0xff]
    %v934 = vld [vmem:[#allocation4 + $0x180] sm:$0xff]
    %v935 = vld [vmem:[#allocation4 + $0x188] sm:$0xff]
    %v936 = vld [vmem:[#allocation4 + $0x190] sm:$0xff]
    %v937 = vld [vmem:[#allocation4 + $0x198] sm:$0xff]
    %v938 = vld [vmem:[#allocation4 + $0x1a0] sm:$0xff]
    %v939 = vld [vmem:[#allocation4 + $0x1a8] sm:$0xff]
    %v940 = vld [vmem:[#allocation4 + $0x1b0] sm:$0xff]
    %v941 = vld [vmem:[#allocation4 + $0x1b8] sm:$0xff]
    %v942 = vld [vmem:[#allocation4 + $0x1c0] sm:$0xff]
    %v943 = vld [vmem:[#allocation4 + $0x1c8] sm:$0xff]
    %v944 = vld [vmem:[#allocation4 + $0x1d0] sm:$0xff]
    %v945 = vld [vmem:[#allocation4 + $0x1d8] sm:$0xff]
    %v946 = vld [vmem:[#allocation4 + $0x1e0] sm:$0xff]
    %v947 = vld [vmem:[#allocation4 + $0x1e8] sm:$0xff]
    %v948 = vld [vmem:[#allocation4 + $0x1f0] sm:$0xff]
    %v949 = vld [vmem:[#allocation4 + $0x1f8] sm:$0xff]
    %v950 = vld [vmem:[#allocation4 + $0x200] sm:$0xff]
    %v951 = vld [vmem:[#allocation4 + $0x208] sm:$0xff]
    %v952 = vld [vmem:[#allocation4 + $0x210] sm:$0xff]
    %v953 = vld [vmem:[#allocation4 + $0x218] sm:$0xff]
    %v954 = vld [vmem:[#allocation4 + $0x220] sm:$0xff]
    %v955 = vld [vmem:[#allocation4 + $0x228] sm:$0xff]
    %v956 = vld [vmem:[#allocation4 + $0x230] sm:$0xff]
    %v957 = vld [vmem:[#allocation4 + $0x238] sm:$0xff]
    %v958 = vld [vmem:[#allocation4 + $0x240] sm:$0xff]
    %v959 = vld [vmem:[#allocation4 + $0x248] sm:$0xff]
    %v960 = vld [vmem:[#allocation4 + $0x250] sm:$0xff]
    %v961 = vld [vmem:[#allocation4 + $0x258] sm:$0xff]
    %v962 = vld [vmem:[#allocation4 + $0x260] sm:$0xff]
    %v963 = vld [vmem:[#allocation4 + $0x268] sm:$0xff]
    %v964 = vld [vmem:[#allocation4 + $0x270] sm:$0xff]
    %v965 = vld [vmem:[#allocation4 + $0x278] sm:$0xff]
    %v966 = vld [vmem:[#allocation4 + $0x280] sm:$0xff]
    %v967 = vld [vmem:[#allocation4 + $0x288] sm:$0xff]
    %v968 = vld [vmem:[#allocation4 + $0x290] sm:$0xff]
    %v969 = vld [vmem:[#allocation4 + $0x298] sm:$0xff]
    %v970 = vld [vmem:[#allocation4 + $0x2a0] sm:$0xff]
    %v971 = vld [vmem:[#allocation4 + $0x2a8] sm:$0xff]
    %v972 = vld [vmem:[#allocation4 + $0x2b0] sm:$0xff]
    %v973 = vld [vmem:[#allocation4 + $0x2b8] sm:$0xff]
    %v974 = vld [vmem:[#allocation4 + $0x2c0] sm:$0xff]
    %v975 = vld [vmem:[#allocation4 + $0x2c8] sm:$0xff]
    %v976 = vld [vmem:[#allocation4 + $0x2d0] sm:$0xff]
    %v977 = vld [vmem:[#allocation4 + $0x2d8] sm:$0xff]
    %v978 = vld [vmem:[#allocation4 + $0x2e0] sm:$0xff]
    %v979 = vld [vmem:[#allocation4 + $0x2e8] sm:$0xff]
    %v980 = vld [vmem:[#allocation4 + $0x2f0] sm:$0xff]
    %v981 = vld [vmem:[#allocation4 + $0x2f8] sm:$0xff]
    %v982 = vld [vmem:[#allocation4 + $0x300] sm:$0xff]
    %v983 = vld [vmem:[#allocation4 + $0x308] sm:$0xff]
    %v984 = vld [vmem:[#allocation4 + $0x310] sm:$0xff]
    %v985 = vld [vmem:[#allocation4 + $0x318] sm:$0xff]
    %v986 = vld [vmem:[#allocation4 + $0x320] sm:$0xff]
    %v987 = vld [vmem:[#allocation4 + $0x328] sm:$0xff]
    %v988 = vld [vmem:[#allocation4 + $0x330] sm:$0xff]
    %v989 = vld [vmem:[#allocation4 + $0x338] sm:$0xff]
    %v990 = vld [vmem:[#allocation4 + $0x340] sm:$0xff]
    %v991 = vld [vmem:[#allocation4 + $0x348] sm:$0xff]
    %v992 = vld [vmem:[#allocation4 + $0x350] sm:$0xff]
    %v993 = vld [vmem:[#allocation4 + $0x358] sm:$0xff]
    %v994 = vld [vmem:[#allocation4 + $0x360] sm:$0xff]
    %v995 = vld [vmem:[#allocation4 + $0x368] sm:$0xff]
    %v996 = vld [vmem:[#allocation4 + $0x370] sm:$0xff]
    %v997 = vld [vmem:[#allocation4 + $0x378] sm:$0xff]
    %v998 = vld [vmem:[#allocation4 + $0x380] sm:$0xff]
    %v999 = vld [vmem:[#allocation4 + $0x388] sm:$0xff]
    %v1000 = vld [vmem:[#allocation4 + $0x390] sm:$0xff]
    %v1001 = vld [vmem:[#allocation4 + $0x398] sm:$0xff]
    %v1002 = vld [vmem:[#allocation4 + $0x3a0] sm:$0xff]
    %v1003 = vld [vmem:[#allocation4 + $0x3a8] sm:$0xff]
    %v1004 = vld [vmem:[#allocation4 + $0x3b0] sm:$0xff]
    %v1005 = vld [vmem:[#allocation4 + $0x3b8] sm:$0xff]
    %v1006 = vld [vmem:[#allocation4 + $0x3c0] sm:$0xff]
    %v1007 = vld [vmem:[#allocation4 + $0x3c8] sm:$0xff]
    %v1008 = vld [vmem:[#allocation4 + $0x3d0] sm:$0xff]
    %v1009 = vld [vmem:[#allocation4 + $0x3d8] sm:$0xff]
    %v1010 = vld [vmem:[#allocation4 + $0x3e0] sm:$0xff]
    %v1011 = vld [vmem:[#allocation4 + $0x3e8] sm:$0xff]
    %v1012 = vld [vmem:[#allocation4 + $0x3f0] sm:$0xff]
    %v1013 = vld [vmem:[#allocation4 + $0x3f8] sm:$0xff]
    %v1014 = vld [vmem:[#allocation4 + $0x400] sm:$0xff]
    %v1015 = vld [vmem:[#allocation4 + $0x408] sm:$0xff]
    %v1016 = vld [vmem:[#allocation4 + $0x410] sm:$0xff]
    %v1017 = vld [vmem:[#allocation4 + $0x418] sm:$0xff]
    %v1018 = vld [vmem:[#allocation4 + $0x420] sm:$0xff]
    %v1019 = vld [vmem:[#allocation4 + $0x428] sm:$0xff]
    %v1020 = vld [vmem:[#allocation4 + $0x430] sm:$0xff]
    %v1021 = vld [vmem:[#allocation4 + $0x438] sm:$0xff]
    %v1022 = vld [vmem:[#allocation4 + $0x440] sm:$0xff]
    %v1023 = vld [vmem:[#allocation4 + $0x448] sm:$0xff]
    %v1024 = vld [vmem:[#allocation4 + $0x450] sm:$0xff]
    %v1025 = vld [vmem:[#allocation4 + $0x458] sm:$0xff]
    %v1026 = vld [vmem:[#allocation4 + $0x460] sm:$0xff]
    %v1027 = vld [vmem:[#allocation4 + $0x468] sm:$0xff]
    %v1028 = vld [vmem:[#allocation4 + $0x470] sm:$0xff]
    %v1029 = vld [vmem:[#allocation4 + $0x478] sm:$0xff]
    %v1030 = vld [vmem:[#allocation4 + $0x480] sm:$0xff]
    %v1031 = vld [vmem:[#allocation4 + $0x488] sm:$0xff]
    %v1032 = vld [vmem:[#allocation4 + $0x490] sm:$0xff]
    %v1033 = vld [vmem:[#allocation4 + $0x498] sm:$0xff]
    %v1034 = vld [vmem:[#allocation4 + $0x4a0] sm:$0xff]
    %v1035 = vld [vmem:[#allocation4 + $0x4a8] sm:$0xff]
    %v1036 = vld [vmem:[#allocation4 + $0x4b0] sm:$0xff]
    %v1037 = vld [vmem:[#allocation4 + $0x4b8] sm:$0xff]
    %v1038 = vld [vmem:[#allocation4 + $0x4c0] sm:$0xff]
    %v1039 = vld [vmem:[#allocation4 + $0x4c8] sm:$0xff]
    %v1040 = vld [vmem:[#allocation4 + $0x4d0] sm:$0xff]
    %v1041 = vld [vmem:[#allocation4 + $0x4d8] sm:$0xff]
    %v1042 = vld [vmem:[#allocation4 + $0x4e0] sm:$0xff]
    %v1043 = vld [vmem:[#allocation4 + $0x4e8] sm:$0xff]
    %v1044 = vld [vmem:[#allocation4 + $0x4f0] sm:$0xff]
    %v1045 = vld [vmem:[#allocation4 + $0x4f8] sm:$0xff]
    %v1046 = vld [vmem:[#allocation4 + $0x500] sm:$0xff]
    %v1047 = vld [vmem:[#allocation4 + $0x508] sm:$0xff]
    %v1048 = vld [vmem:[#allocation4 + $0x510] sm:$0xff]
    %v1049 = vld [vmem:[#allocation4 + $0x518] sm:$0xff]
    %v1050 = vld [vmem:[#allocation4 + $0x520] sm:$0xff]
    %v1051 = vld [vmem:[#allocation4 + $0x528] sm:$0xff]
    %v1052 = vld [vmem:[#allocation4 + $0x530] sm:$0xff]
    %v1053 = vld [vmem:[#allocation4 + $0x538] sm:$0xff]
    %v1054 = vld [vmem:[#allocation4 + $0x540] sm:$0xff]
    %v1055 = vld [vmem:[#allocation4 + $0x548] sm:$0xff]
    %v1056 = vld [vmem:[#allocation4 + $0x550] sm:$0xff]
    %v1057 = vld [vmem:[#allocation4 + $0x558] sm:$0xff]
    %v1058 = vld [vmem:[#allocation4 + $0x560] sm:$0xff]
    %v1059 = vld [vmem:[#allocation4 + $0x568] sm:$0xff]
    %v1060 = vld [vmem:[#allocation4 + $0x570] sm:$0xff]
    %v1061 = vld [vmem:[#allocation4 + $0x578] sm:$0xff]
    %v1062 = vld [vmem:[#allocation4 + $0x580] sm:$0xff]
    %v1063 = vld [vmem:[#allocation4 + $0x588] sm:$0xff]
    %v1064 = vld [vmem:[#allocation4 + $0x590] sm:$0xff]
    %v1065 = vld [vmem:[#allocation4 + $0x598] sm:$0xff]
    %v1066 = vld [vmem:[#allocation4 + $0x5a0] sm:$0xff]
    %v1067 = vld [vmem:[#allocation4 + $0x5a8] sm:$0xff]
    %v1068 = vld [vmem:[#allocation4 + $0x5b0] sm:$0xff]
    %v1069 = vld [vmem:[#allocation4 + $0x5b8] sm:$0xff]
    %v1070 = vld [vmem:[#allocation4 + $0x5c0] sm:$0xff]
    %v1071 = vld [vmem:[#allocation4 + $0x5c8] sm:$0xff]
    %v1072 = vld [vmem:[#allocation4 + $0x5d0] sm:$0xff]
    %v1073 = vld [vmem:[#allocation4 + $0x5d8] sm:$0xff]
    %v1074 = vld [vmem:[#allocation4 + $0x5e0] sm:$0xff]
    %v1075 = vld [vmem:[#allocation4 + $0x5e8] sm:$0xff]
    %v1076 = vld [vmem:[#allocation4 + $0x5f0] sm:$0xff]
    %v1077 = vld [vmem:[#allocation4 + $0x5f8] sm:$0xff]
    %v1078 = vld [vmem:[#allocation4 + $0x600] sm:$0xff]
    %v1079 = vld [vmem:[#allocation4 + $0x608] sm:$0xff]
    %v1080 = vld [vmem:[#allocation4 + $0x610] sm:$0xff]
    %v1081 = vld [vmem:[#allocation4 + $0x618] sm:$0xff]
    %v1082 = vld [vmem:[#allocation4 + $0x620] sm:$0xff]
    %v1083 = vld [vmem:[#allocation4 + $0x628] sm:$0xff]
    %v1084 = vld [vmem:[#allocation4 + $0x630] sm:$0xff]
    %v1085 = vld [vmem:[#allocation4 + $0x638] sm:$0xff]
    %v1086 = vld [vmem:[#allocation4 + $0x640] sm:$0xff]
    %v1087 = vld [vmem:[#allocation4 + $0x648] sm:$0xff]
    %v1088 = vld [vmem:[#allocation4 + $0x650] sm:$0xff]
    %v1089 = vld [vmem:[#allocation4 + $0x658] sm:$0xff]
    %v1090 = vld [vmem:[#allocation4 + $0x660] sm:$0xff]
    %v1091 = vld [vmem:[#allocation4 + $0x668] sm:$0xff]
    %v1092 = vld [vmem:[#allocation4 + $0x670] sm:$0xff]
    %v1093 = vld [vmem:[#allocation4 + $0x678] sm:$0xff]
    %v1094 = vld [vmem:[#allocation4 + $0x680] sm:$0xff]
    %v1095 = vld [vmem:[#allocation4 + $0x688] sm:$0xff]
    %v1096 = vld [vmem:[#allocation4 + $0x690] sm:$0xff]
    %v1097 = vld [vmem:[#allocation4 + $0x698] sm:$0xff]
    %v1098 = vld [vmem:[#allocation4 + $0x6a0] sm:$0xff]
    %v1099 = vld [vmem:[#allocation4 + $0x6a8] sm:$0xff]
    %v1100 = vld [vmem:[#allocation4 + $0x6b0] sm:$0xff]
    %v1101 = vld [vmem:[#allocation4 + $0x6b8] sm:$0xff]
    %v1102 = vld [vmem:[#allocation4 + $0x6c0] sm:$0xff]
    %v1103 = vld [vmem:[#allocation4 + $0x6c8] sm:$0xff]
    %v1104 = vld [vmem:[#allocation4 + $0x6d0] sm:$0xff]
    %v1105 = vld [vmem:[#allocation4 + $0x6d8] sm:$0xff]
    %v1106 = vld [vmem:[#allocation4 + $0x6e0] sm:$0xff]
    %v1107 = vld [vmem:[#allocation4 + $0x6e8] sm:$0xff]
    %v1108 = vld [vmem:[#allocation4 + $0x6f0] sm:$0xff]
    %v1109 = vld [vmem:[#allocation4 + $0x6f8] sm:$0xff]
    %v1110 = vld [vmem:[#allocation4 + $0x700] sm:$0xff]
    %v1111 = vld [vmem:[#allocation4 + $0x708] sm:$0xff]
    %v1112 = vld [vmem:[#allocation4 + $0x710] sm:$0xff]
    %v1113 = vld [vmem:[#allocation4 + $0x718] sm:$0xff]
    %v1114 = vld [vmem:[#allocation4 + $0x720] sm:$0xff]
    %v1115 = vld [vmem:[#allocation4 + $0x728] sm:$0xff]
    %v1116 = vld [vmem:[#allocation4 + $0x730] sm:$0xff]
    %v1117 = vld [vmem:[#allocation4 + $0x738] sm:$0xff]
    %v1118 = vld [vmem:[#allocation4 + $0x740] sm:$0xff]
    %v1119 = vld [vmem:[#allocation4 + $0x748] sm:$0xff]
    %v1120 = vld [vmem:[#allocation4 + $0x750] sm:$0xff]
    %v1121 = vld [vmem:[#allocation4 + $0x758] sm:$0xff]
    %v1122 = vld [vmem:[#allocation4 + $0x760] sm:$0xff]
    %v1123 = vld [vmem:[#allocation4 + $0x768] sm:$0xff]
    %v1124 = vld [vmem:[#allocation4 + $0x770] sm:$0xff]
    %v1125 = vld [vmem:[#allocation4 + $0x778] sm:$0xff]
    %v1126 = vld [vmem:[#allocation4 + $0x780] sm:$0xff]
    %v1127 = vld [vmem:[#allocation4 + $0x788] sm:$0xff]
    %v1128 = vld [vmem:[#allocation4 + $0x790] sm:$0xff]
    %v1129 = vld [vmem:[#allocation4 + $0x798] sm:$0xff]
    %v1130 = vld [vmem:[#allocation4 + $0x7a0] sm:$0xff]
    %v1131 = vld [vmem:[#allocation4 + $0x7a8] sm:$0xff]
    %v1132 = vld [vmem:[#allocation4 + $0x7b0] sm:$0xff]
    %v1133 = vld [vmem:[#allocation4 + $0x7b8] sm:$0xff]
    %v1134 = vld [vmem:[#allocation4 + $0x7c0] sm:$0xff]
    %v1135 = vld [vmem:[#allocation4 + $0x7c8] sm:$0xff]
    %v1136 = vld [vmem:[#allocation4 + $0x7d0] sm:$0xff]
    %v1137 = vld [vmem:[#allocation4 + $0x7d8] sm:$0xff]
    %v1138 = vld [vmem:[#allocation4 + $0x7e0] sm:$0xff]
    %v1139 = vld [vmem:[#allocation4 + $0x7e8] sm:$0xff]
    %v1140 = vld [vmem:[#allocation4 + $0x7f0] sm:$0xff]
    %v1141 = vld [vmem:[#allocation4 + $0x7f8] sm:$0xff]
    %v1142 = vld [vmem:[%s4] sm:$0xf]
    %v1144 = vlaneseq
    %v1145 = vshrl.u32 %v1144, 7
    %v1146 = vsub.s32 0, %v1145
    %v1147 = vrot.slane %v1142, %v1146
    %v1148 = vlaneseq
    %v1149 = vshrl.u32 %v1148, 7
    %v1150 = vsub.s32 1, %v1149
    %v1151 = vrot.slane %v1142, %v1150
    %v1152 = vlaneseq
    %v1153 = vshrl.u32 %v1152, 7
    %v1154 = vsub.s32 2, %v1153
    %v1155 = vrot.slane %v1142, %v1154
    %v1156 = vlaneseq
    %v1157 = vshrl.u32 %v1156, 7
    %v1158 = vsub.s32 3, %v1157
    %v1159 = vrot.slane %v1142, %v1158
    %v1420 = vunpack.c.l.b16 %v886
    %v1421 = vunpack.c.h.b16 %v886
    %v1422 = vunpack.c.l.b16 %v887
    %v1423 = vunpack.c.h.b16 %v887
    %v1424 = vunpack.c.l.b16 %v888
    %v1425 = vunpack.c.h.b16 %v888
    %v1426 = vunpack.c.l.b16 %v889
    %v1427 = vunpack.c.h.b16 %v889
    %v1428 = vunpack.c.l.b16 %v890
    %v1429 = vunpack.c.h.b16 %v890
    %v1430 = vunpack.c.l.b16 %v891
    %v1431 = vunpack.c.h.b16 %v891
    %v1432 = vunpack.c.l.b16 %v892
    %v1433 = vunpack.c.h.b16 %v892
    %v1434 = vunpack.c.l.b16 %v893
    %v1435 = vunpack.c.h.b16 %v893
    %v1436 = vunpack.c.l.b16 %v894
    %v1437 = vunpack.c.h.b16 %v894
    %v1438 = vunpack.c.l.b16 %v895
    %v1439 = vunpack.c.h.b16 %v895
    %v1440 = vunpack.c.l.b16 %v896
    %v1441 = vunpack.c.h.b16 %v896
    %v1442 = vunpack.c.l.b16 %v897
    %v1443 = vunpack.c.h.b16 %v897
    %v1444 = vunpack.c.l.b16 %v898
    %v1445 = vunpack.c.h.b16 %v898
    %v1446 = vunpack.c.l.b16 %v899
    %v1447 = vunpack.c.h.b16 %v899
    %v1448 = vunpack.c.l.b16 %v900
    %v1449 = vunpack.c.h.b16 %v900
    %v1450 = vunpack.c.l.b16 %v901
    %v1451 = vunpack.c.h.b16 %v901
    %v1452 = vunpack.c.l.b16 %v902
    %v1453 = vunpack.c.h.b16 %v902
    %v1454 = vunpack.c.l.b16 %v903
    %v1455 = vunpack.c.h.b16 %v903
    %v1456 = vunpack.c.l.b16 %v904
    %v1457 = vunpack.c.h.b16 %v904
    %v1458 = vunpack.c.l.b16 %v905
    %v1459 = vunpack.c.h.b16 %v905
    %v1460 = vunpack.c.l.b16 %v906
    %v1461 = vunpack.c.h.b16 %v906
    %v1462 = vunpack.c.l.b16 %v907
    %v1463 = vunpack.c.h.b16 %v907
    %v1464 = vunpack.c.l.b16 %v908
    %v1465 = vunpack.c.h.b16 %v908
    %v1466 = vunpack.c.l.b16 %v909
    %v1467 = vunpack.c.h.b16 %v909
    %v1468 = vunpack.c.l.b16 %v910
    %v1469 = vunpack.c.h.b16 %v910
    %v1470 = vunpack.c.l.b16 %v911
    %v1471 = vunpack.c.h.b16 %v911
    %v1472 = vunpack.c.l.b16 %v912
    %v1473 = vunpack.c.h.b16 %v912
    %v1474 = vunpack.c.l.b16 %v913
    %v1475 = vunpack.c.h.b16 %v913
    %v1476 = vunpack.c.l.b16 %v914
    %v1477 = vunpack.c.h.b16 %v914
    %v1478 = vunpack.c.l.b16 %v915
    %v1479 = vunpack.c.h.b16 %v915
    %v1480 = vunpack.c.l.b16 %v916
    %v1481 = vunpack.c.h.b16 %v916
    %v1482 = vunpack.c.l.b16 %v917
    %v1483 = vunpack.c.h.b16 %v917
    %v1484 = vunpack.c.l.b16 %v918
    %v1485 = vunpack.c.h.b16 %v918
    %v1486 = vunpack.c.l.b16 %v919
    %v1487 = vunpack.c.h.b16 %v919
    %v1488 = vunpack.c.l.b16 %v920
    %v1489 = vunpack.c.h.b16 %v920
    %v1490 = vunpack.c.l.b16 %v921
    %v1491 = vunpack.c.h.b16 %v921
    %v1492 = vunpack.c.l.b16 %v922
    %v1493 = vunpack.c.h.b16 %v922
    %v1494 = vunpack.c.l.b16 %v923
    %v1495 = vunpack.c.h.b16 %v923
    %v1496 = vunpack.c.l.b16 %v924
    %v1497 = vunpack.c.h.b16 %v924
    %v1498 = vunpack.c.l.b16 %v925
    %v1499 = vunpack.c.h.b16 %v925
    %v1500 = vunpack.c.l.b16 %v926
    %v1501 = vunpack.c.h.b16 %v926
    %v1502 = vunpack.c.l.b16 %v927
    %v1503 = vunpack.c.h.b16 %v927
    %v1504 = vunpack.c.l.b16 %v928
    %v1505 = vunpack.c.h.b16 %v928
    %v1506 = vunpack.c.l.b16 %v929
    %v1507 = vunpack.c.h.b16 %v929
    %v1508 = vunpack.c.l.b16 %v930
    %v1509 = vunpack.c.h.b16 %v930
    %v1510 = vunpack.c.l.b16 %v931
    %v1511 = vunpack.c.h.b16 %v931
    %v1512 = vunpack.c.l.b16 %v932
    %v1513 = vunpack.c.h.b16 %v932
    %v1514 = vunpack.c.l.b16 %v933
    %v1515 = vunpack.c.h.b16 %v933
    %v1516 = vunpack.c.l.b16 %v934
    %v1517 = vunpack.c.h.b16 %v934
    %v1518 = vunpack.c.l.b16 %v935
    %v1519 = vunpack.c.h.b16 %v935
    %v1520 = vunpack.c.l.b16 %v936
    %v1521 = vunpack.c.h.b16 %v936
    %v1522 = vunpack.c.l.b16 %v937
    %v1523 = vunpack.c.h.b16 %v937
    %v1524 = vunpack.c.l.b16 %v938
    %v1525 = vunpack.c.h.b16 %v938
    %v1526 = vunpack.c.l.b16 %v939
    %v1527 = vunpack.c.h.b16 %v939
    %v1528 = vunpack.c.l.b16 %v940
    %v1529 = vunpack.c.h.b16 %v940
    %v1530 = vunpack.c.l.b16 %v941
    %v1531 = vunpack.c.h.b16 %v941
    %v1532 = vunpack.c.l.b16 %v942
    %v1533 = vunpack.c.h.b16 %v942
    %v1534 = vunpack.c.l.b16 %v943
    %v1535 = vunpack.c.h.b16 %v943
    %v1536 = vunpack.c.l.b16 %v944
    %v1537 = vunpack.c.h.b16 %v944
    %v1538 = vunpack.c.l.b16 %v945
    %v1539 = vunpack.c.h.b16 %v945
    %v1540 = vunpack.c.l.b16 %v946
    %v1541 = vunpack.c.h.b16 %v946
    %v1542 = vunpack.c.l.b16 %v947
    %v1543 = vunpack.c.h.b16 %v947
    %v1544 = vunpack.c.l.b16 %v948
    %v1545 = vunpack.c.h.b16 %v948
    %v1546 = vunpack.c.l.b16 %v949
    %v1547 = vunpack.c.h.b16 %v949
    %v1548 = vunpack.c.l.b16 %v950
    %v1549 = vunpack.c.h.b16 %v950
    %v1550 = vunpack.c.l.b16 %v951
    %v1551 = vunpack.c.h.b16 %v951
    %v1552 = vunpack.c.l.b16 %v952
    %v1553 = vunpack.c.h.b16 %v952
    %v1554 = vunpack.c.l.b16 %v953
    %v1555 = vunpack.c.h.b16 %v953
    %v1556 = vunpack.c.l.b16 %v954
    %v1557 = vunpack.c.h.b16 %v954
    %v1558 = vunpack.c.l.b16 %v955
    %v1559 = vunpack.c.h.b16 %v955
    %v1560 = vunpack.c.l.b16 %v956
    %v1561 = vunpack.c.h.b16 %v956
    %v1562 = vunpack.c.l.b16 %v957
    %v1563 = vunpack.c.h.b16 %v957
    %v1564 = vunpack.c.l.b16 %v958
    %v1565 = vunpack.c.h.b16 %v958
    %v1566 = vunpack.c.l.b16 %v959
    %v1567 = vunpack.c.h.b16 %v959
    %v1568 = vunpack.c.l.b16 %v960
    %v1569 = vunpack.c.h.b16 %v960
    %v1570 = vunpack.c.l.b16 %v961
    %v1571 = vunpack.c.h.b16 %v961
    %v1572 = vunpack.c.l.b16 %v962
    %v1573 = vunpack.c.h.b16 %v962
    %v1574 = vunpack.c.l.b16 %v963
    %v1575 = vunpack.c.h.b16 %v963
    %v1576 = vunpack.c.l.b16 %v964
    %v1577 = vunpack.c.h.b16 %v964
    %v1578 = vunpack.c.l.b16 %v965
    %v1579 = vunpack.c.h.b16 %v965
    %v1580 = vunpack.c.l.b16 %v966
    %v1581 = vunpack.c.h.b16 %v966
    %v1582 = vunpack.c.l.b16 %v967
    %v1583 = vunpack.c.h.b16 %v967
    %v1584 = vunpack.c.l.b16 %v968
    %v1585 = vunpack.c.h.b16 %v968
    %v1586 = vunpack.c.l.b16 %v969
    %v1587 = vunpack.c.h.b16 %v969
    %v1588 = vunpack.c.l.b16 %v970
    %v1589 = vunpack.c.h.b16 %v970
    %v1590 = vunpack.c.l.b16 %v971
    %v1591 = vunpack.c.h.b16 %v971
    %v1592 = vunpack.c.l.b16 %v972
    %v1593 = vunpack.c.h.b16 %v972
    %v1594 = vunpack.c.l.b16 %v973
    %v1595 = vunpack.c.h.b16 %v973
    %v1596 = vunpack.c.l.b16 %v974
    %v1597 = vunpack.c.h.b16 %v974
    %v1598 = vunpack.c.l.b16 %v975
    %v1599 = vunpack.c.h.b16 %v975
    %v1600 = vunpack.c.l.b16 %v976
    %v1601 = vunpack.c.h.b16 %v976
    %v1602 = vunpack.c.l.b16 %v977
    %v1603 = vunpack.c.h.b16 %v977
    %v1604 = vunpack.c.l.b16 %v978
    %v1605 = vunpack.c.h.b16 %v978
    %v1606 = vunpack.c.l.b16 %v979
    %v1607 = vunpack.c.h.b16 %v979
    %v1608 = vunpack.c.l.b16 %v980
    %v1609 = vunpack.c.h.b16 %v980
    %v1610 = vunpack.c.l.b16 %v981
    %v1611 = vunpack.c.h.b16 %v981
    %v1612 = vunpack.c.l.b16 %v982
    %v1613 = vunpack.c.h.b16 %v982
    %v1614 = vunpack.c.l.b16 %v983
    %v1615 = vunpack.c.h.b16 %v983
    %v1616 = vunpack.c.l.b16 %v984
    %v1617 = vunpack.c.h.b16 %v984
    %v1618 = vunpack.c.l.b16 %v985
    %v1619 = vunpack.c.h.b16 %v985
    %v1620 = vunpack.c.l.b16 %v986
    %v1621 = vunpack.c.h.b16 %v986
    %v1622 = vunpack.c.l.b16 %v987
    %v1623 = vunpack.c.h.b16 %v987
    %v1624 = vunpack.c.l.b16 %v988
    %v1625 = vunpack.c.h.b16 %v988
    %v1626 = vunpack.c.l.b16 %v989
    %v1627 = vunpack.c.h.b16 %v989
    %v1628 = vunpack.c.l.b16 %v990
    %v1629 = vunpack.c.h.b16 %v990
    %v1630 = vunpack.c.l.b16 %v991
    %v1631 = vunpack.c.h.b16 %v991
    %v1632 = vunpack.c.l.b16 %v992
    %v1633 = vunpack.c.h.b16 %v992
    %v1634 = vunpack.c.l.b16 %v993
    %v1635 = vunpack.c.h.b16 %v993
    %v1636 = vunpack.c.l.b16 %v994
    %v1637 = vunpack.c.h.b16 %v994
    %v1638 = vunpack.c.l.b16 %v995
    %v1639 = vunpack.c.h.b16 %v995
    %v1640 = vunpack.c.l.b16 %v996
    %v1641 = vunpack.c.h.b16 %v996
    %v1642 = vunpack.c.l.b16 %v997
    %v1643 = vunpack.c.h.b16 %v997
    %v1644 = vunpack.c.l.b16 %v998
    %v1645 = vunpack.c.h.b16 %v998
    %v1646 = vunpack.c.l.b16 %v999
    %v1647 = vunpack.c.h.b16 %v999
    %v1648 = vunpack.c.l.b16 %v1000
    %v1649 = vunpack.c.h.b16 %v1000
    %v1650 = vunpack.c.l.b16 %v1001
    %v1651 = vunpack.c.h.b16 %v1001
    %v1652 = vunpack.c.l.b16 %v1002
    %v1653 = vunpack.c.h.b16 %v1002
    %v1654 = vunpack.c.l.b16 %v1003
    %v1655 = vunpack.c.h.b16 %v1003
    %v1656 = vunpack.c.l.b16 %v1004
    %v1657 = vunpack.c.h.b16 %v1004
    %v1658 = vunpack.c.l.b16 %v1005
    %v1659 = vunpack.c.h.b16 %v1005
    %v1660 = vunpack.c.l.b16 %v1006
    %v1661 = vunpack.c.h.b16 %v1006
    %v1662 = vunpack.c.l.b16 %v1007
    %v1663 = vunpack.c.h.b16 %v1007
    %v1664 = vunpack.c.l.b16 %v1008
    %v1665 = vunpack.c.h.b16 %v1008
    %v1666 = vunpack.c.l.b16 %v1009
    %v1667 = vunpack.c.h.b16 %v1009
    %v1668 = vunpack.c.l.b16 %v1010
    %v1669 = vunpack.c.h.b16 %v1010
    %v1670 = vunpack.c.l.b16 %v1011
    %v1671 = vunpack.c.h.b16 %v1011
    %v1672 = vunpack.c.l.b16 %v1012
    %v1673 = vunpack.c.h.b16 %v1012
    %v1674 = vunpack.c.l.b16 %v1013
    %v1675 = vunpack.c.h.b16 %v1013
    %v1676 = vunpack.c.l.b16 %v1014
    %v1677 = vunpack.c.h.b16 %v1014
    %v1678 = vunpack.c.l.b16 %v1015
    %v1679 = vunpack.c.h.b16 %v1015
    %v1680 = vunpack.c.l.b16 %v1016
    %v1681 = vunpack.c.h.b16 %v1016
    %v1682 = vunpack.c.l.b16 %v1017
    %v1683 = vunpack.c.h.b16 %v1017
    %v1684 = vunpack.c.l.b16 %v1018
    %v1685 = vunpack.c.h.b16 %v1018
    %v1686 = vunpack.c.l.b16 %v1019
    %v1687 = vunpack.c.h.b16 %v1019
    %v1688 = vunpack.c.l.b16 %v1020
    %v1689 = vunpack.c.h.b16 %v1020
    %v1690 = vunpack.c.l.b16 %v1021
    %v1691 = vunpack.c.h.b16 %v1021
    %v1692 = vunpack.c.l.b16 %v1022
    %v1693 = vunpack.c.h.b16 %v1022
    %v1694 = vunpack.c.l.b16 %v1023
    %v1695 = vunpack.c.h.b16 %v1023
    %v1696 = vunpack.c.l.b16 %v1024
    %v1697 = vunpack.c.h.b16 %v1024
    %v1698 = vunpack.c.l.b16 %v1025
    %v1699 = vunpack.c.h.b16 %v1025
    %v1700 = vunpack.c.l.b16 %v1026
    %v1701 = vunpack.c.h.b16 %v1026
    %v1702 = vunpack.c.l.b16 %v1027
    %v1703 = vunpack.c.h.b16 %v1027
    %v1704 = vunpack.c.l.b16 %v1028
    %v1705 = vunpack.c.h.b16 %v1028
    %v1706 = vunpack.c.l.b16 %v1029
    %v1707 = vunpack.c.h.b16 %v1029
    %v1708 = vunpack.c.l.b16 %v1030
    %v1709 = vunpack.c.h.b16 %v1030
    %v1710 = vunpack.c.l.b16 %v1031
    %v1711 = vunpack.c.h.b16 %v1031
    %v1712 = vunpack.c.l.b16 %v1032
    %v1713 = vunpack.c.h.b16 %v1032
    %v1714 = vunpack.c.l.b16 %v1033
    %v1715 = vunpack.c.h.b16 %v1033
    %v1716 = vunpack.c.l.b16 %v1034
    %v1717 = vunpack.c.h.b16 %v1034
    %v1718 = vunpack.c.l.b16 %v1035
    %v1719 = vunpack.c.h.b16 %v1035
    %v1720 = vunpack.c.l.b16 %v1036
    %v1721 = vunpack.c.h.b16 %v1036
    %v1722 = vunpack.c.l.b16 %v1037
    %v1723 = vunpack.c.h.b16 %v1037
    %v1724 = vunpack.c.l.b16 %v1038
    %v1725 = vunpack.c.h.b16 %v1038
    %v1726 = vunpack.c.l.b16 %v1039
    %v1727 = vunpack.c.h.b16 %v1039
    %v1728 = vunpack.c.l.b16 %v1040
    %v1729 = vunpack.c.h.b16 %v1040
    %v1730 = vunpack.c.l.b16 %v1041
    %v1731 = vunpack.c.h.b16 %v1041
    %v1732 = vunpack.c.l.b16 %v1042
    %v1733 = vunpack.c.h.b16 %v1042
    %v1734 = vunpack.c.l.b16 %v1043
    %v1735 = vunpack.c.h.b16 %v1043
    %v1736 = vunpack.c.l.b16 %v1044
    %v1737 = vunpack.c.h.b16 %v1044
    %v1738 = vunpack.c.l.b16 %v1045
    %v1739 = vunpack.c.h.b16 %v1045
    %v1740 = vunpack.c.l.b16 %v1046
    %v1741 = vunpack.c.h.b16 %v1046
    %v1742 = vunpack.c.l.b16 %v1047
    %v1743 = vunpack.c.h.b16 %v1047
    %v1744 = vunpack.c.l.b16 %v1048
    %v1745 = vunpack.c.h.b16 %v1048
    %v1746 = vunpack.c.l.b16 %v1049
    %v1747 = vunpack.c.h.b16 %v1049
    %v1748 = vunpack.c.l.b16 %v1050
    %v1749 = vunpack.c.h.b16 %v1050
    %v1750 = vunpack.c.l.b16 %v1051
    %v1751 = vunpack.c.h.b16 %v1051
    %v1752 = vunpack.c.l.b16 %v1052
    %v1753 = vunpack.c.h.b16 %v1052
    %v1754 = vunpack.c.l.b16 %v1053
    %v1755 = vunpack.c.h.b16 %v1053
    %v1756 = vunpack.c.l.b16 %v1054
    %v1757 = vunpack.c.h.b16 %v1054
    %v1758 = vunpack.c.l.b16 %v1055
    %v1759 = vunpack.c.h.b16 %v1055
    %v1760 = vunpack.c.l.b16 %v1056
    %v1761 = vunpack.c.h.b16 %v1056
    %v1762 = vunpack.c.l.b16 %v1057
    %v1763 = vunpack.c.h.b16 %v1057
    %v1764 = vunpack.c.l.b16 %v1058
    %v1765 = vunpack.c.h.b16 %v1058
    %v1766 = vunpack.c.l.b16 %v1059
    %v1767 = vunpack.c.h.b16 %v1059
    %v1768 = vunpack.c.l.b16 %v1060
    %v1769 = vunpack.c.h.b16 %v1060
    %v1770 = vunpack.c.l.b16 %v1061
    %v1771 = vunpack.c.h.b16 %v1061
    %v1772 = vunpack.c.l.b16 %v1062
    %v1773 = vunpack.c.h.b16 %v1062
    %v1774 = vunpack.c.l.b16 %v1063
    %v1775 = vunpack.c.h.b16 %v1063
    %v1776 = vunpack.c.l.b16 %v1064
    %v1777 = vunpack.c.h.b16 %v1064
    %v1778 = vunpack.c.l.b16 %v1065
    %v1779 = vunpack.c.h.b16 %v1065
    %v1780 = vunpack.c.l.b16 %v1066
    %v1781 = vunpack.c.h.b16 %v1066
    %v1782 = vunpack.c.l.b16 %v1067
    %v1783 = vunpack.c.h.b16 %v1067
    %v1784 = vunpack.c.l.b16 %v1068
    %v1785 = vunpack.c.h.b16 %v1068
    %v1786 = vunpack.c.l.b16 %v1069
    %v1787 = vunpack.c.h.b16 %v1069
    %v1788 = vunpack.c.l.b16 %v1070
    %v1789 = vunpack.c.h.b16 %v1070
    %v1790 = vunpack.c.l.b16 %v1071
    %v1791 = vunpack.c.h.b16 %v1071
    %v1792 = vunpack.c.l.b16 %v1072
    %v1793 = vunpack.c.h.b16 %v1072
    %v1794 = vunpack.c.l.b16 %v1073
    %v1795 = vunpack.c.h.b16 %v1073
    %v1796 = vunpack.c.l.b16 %v1074
    %v1797 = vunpack.c.h.b16 %v1074
    %v1798 = vunpack.c.l.b16 %v1075
    %v1799 = vunpack.c.h.b16 %v1075
    %v1800 = vunpack.c.l.b16 %v1076
    %v1801 = vunpack.c.h.b16 %v1076
    %v1802 = vunpack.c.l.b16 %v1077
    %v1803 = vunpack.c.h.b16 %v1077
    %v1804 = vunpack.c.l.b16 %v1078
    %v1805 = vunpack.c.h.b16 %v1078
    %v1806 = vunpack.c.l.b16 %v1079
    %v1807 = vunpack.c.h.b16 %v1079
    %v1808 = vunpack.c.l.b16 %v1080
    %v1809 = vunpack.c.h.b16 %v1080
    %v1810 = vunpack.c.l.b16 %v1081
    %v1811 = vunpack.c.h.b16 %v1081
    %v1812 = vunpack.c.l.b16 %v1082
    %v1813 = vunpack.c.h.b16 %v1082
    %v1814 = vunpack.c.l.b16 %v1083
    %v1815 = vunpack.c.h.b16 %v1083
    %v1816 = vunpack.c.l.b16 %v1084
    %v1817 = vunpack.c.h.b16 %v1084
    %v1818 = vunpack.c.l.b16 %v1085
    %v1819 = vunpack.c.h.b16 %v1085
    %v1820 = vunpack.c.l.b16 %v1086
    %v1821 = vunpack.c.h.b16 %v1086
    %v1822 = vunpack.c.l.b16 %v1087
    %v1823 = vunpack.c.h.b16 %v1087
    %v1824 = vunpack.c.l.b16 %v1088
    %v1825 = vunpack.c.h.b16 %v1088
    %v1826 = vunpack.c.l.b16 %v1089
    %v1827 = vunpack.c.h.b16 %v1089
    %v1828 = vunpack.c.l.b16 %v1090
    %v1829 = vunpack.c.h.b16 %v1090
    %v1830 = vunpack.c.l.b16 %v1091
    %v1831 = vunpack.c.h.b16 %v1091
    %v1832 = vunpack.c.l.b16 %v1092
    %v1833 = vunpack.c.h.b16 %v1092
    %v1834 = vunpack.c.l.b16 %v1093
    %v1835 = vunpack.c.h.b16 %v1093
    %v1836 = vunpack.c.l.b16 %v1094
    %v1837 = vunpack.c.h.b16 %v1094
    %v1838 = vunpack.c.l.b16 %v1095
    %v1839 = vunpack.c.h.b16 %v1095
    %v1840 = vunpack.c.l.b16 %v1096
    %v1841 = vunpack.c.h.b16 %v1096
    %v1842 = vunpack.c.l.b16 %v1097
    %v1843 = vunpack.c.h.b16 %v1097
    %v1844 = vunpack.c.l.b16 %v1098
    %v1845 = vunpack.c.h.b16 %v1098
    %v1846 = vunpack.c.l.b16 %v1099
    %v1847 = vunpack.c.h.b16 %v1099
    %v1848 = vunpack.c.l.b16 %v1100
    %v1849 = vunpack.c.h.b16 %v1100
    %v1850 = vunpack.c.l.b16 %v1101
    %v1851 = vunpack.c.h.b16 %v1101
    %v1852 = vunpack.c.l.b16 %v1102
    %v1853 = vunpack.c.h.b16 %v1102
    %v1854 = vunpack.c.l.b16 %v1103
    %v1855 = vunpack.c.h.b16 %v1103
    %v1856 = vunpack.c.l.b16 %v1104
    %v1857 = vunpack.c.h.b16 %v1104
    %v1858 = vunpack.c.l.b16 %v1105
    %v1859 = vunpack.c.h.b16 %v1105
    %v1860 = vunpack.c.l.b16 %v1106
    %v1861 = vunpack.c.h.b16 %v1106
    %v1862 = vunpack.c.l.b16 %v1107
    %v1863 = vunpack.c.h.b16 %v1107
    %v1864 = vunpack.c.l.b16 %v1108
    %v1865 = vunpack.c.h.b16 %v1108
    %v1866 = vunpack.c.l.b16 %v1109
    %v1867 = vunpack.c.h.b16 %v1109
    %v1868 = vunpack.c.l.b16 %v1110
    %v1869 = vunpack.c.h.b16 %v1110
    %v1870 = vunpack.c.l.b16 %v1111
    %v1871 = vunpack.c.h.b16 %v1111
    %v1872 = vunpack.c.l.b16 %v1112
    %v1873 = vunpack.c.h.b16 %v1112
    %v1874 = vunpack.c.l.b16 %v1113
    %v1875 = vunpack.c.h.b16 %v1113
    %v1876 = vunpack.c.l.b16 %v1114
    %v1877 = vunpack.c.h.b16 %v1114
    %v1878 = vunpack.c.l.b16 %v1115
    %v1879 = vunpack.c.h.b16 %v1115
    %v1880 = vunpack.c.l.b16 %v1116
    %v1881 = vunpack.c.h.b16 %v1116
    %v1882 = vunpack.c.l.b16 %v1117
    %v1883 = vunpack.c.h.b16 %v1117
    %v1884 = vunpack.c.l.b16 %v1118
    %v1885 = vunpack.c.h.b16 %v1118
    %v1886 = vunpack.c.l.b16 %v1119
    %v1887 = vunpack.c.h.b16 %v1119
    %v1888 = vunpack.c.l.b16 %v1120
    %v1889 = vunpack.c.h.b16 %v1120
    %v1890 = vunpack.c.l.b16 %v1121
    %v1891 = vunpack.c.h.b16 %v1121
    %v1892 = vunpack.c.l.b16 %v1122
    %v1893 = vunpack.c.h.b16 %v1122
    %v1894 = vunpack.c.l.b16 %v1123
    %v1895 = vunpack.c.h.b16 %v1123
    %v1896 = vunpack.c.l.b16 %v1124
    %v1897 = vunpack.c.h.b16 %v1124
    %v1898 = vunpack.c.l.b16 %v1125
    %v1899 = vunpack.c.h.b16 %v1125
    %v1900 = vunpack.c.l.b16 %v1126
    %v1901 = vunpack.c.h.b16 %v1126
    %v1902 = vunpack.c.l.b16 %v1127
    %v1903 = vunpack.c.h.b16 %v1127
    %v1904 = vunpack.c.l.b16 %v1128
    %v1905 = vunpack.c.h.b16 %v1128
    %v1906 = vunpack.c.l.b16 %v1129
    %v1907 = vunpack.c.h.b16 %v1129
    %v1908 = vunpack.c.l.b16 %v1130
    %v1909 = vunpack.c.h.b16 %v1130
    %v1910 = vunpack.c.l.b16 %v1131
    %v1911 = vunpack.c.h.b16 %v1131
    %v1912 = vunpack.c.l.b16 %v1132
    %v1913 = vunpack.c.h.b16 %v1132
    %v1914 = vunpack.c.l.b16 %v1133
    %v1915 = vunpack.c.h.b16 %v1133
    %v1916 = vunpack.c.l.b16 %v1134
    %v1917 = vunpack.c.h.b16 %v1134
    %v1918 = vunpack.c.l.b16 %v1135
    %v1919 = vunpack.c.h.b16 %v1135
    %v1920 = vunpack.c.l.b16 %v1136
    %v1921 = vunpack.c.h.b16 %v1136
    %v1922 = vunpack.c.l.b16 %v1137
    %v1923 = vunpack.c.h.b16 %v1137
    %v1924 = vunpack.c.l.b16 %v1138
    %v1925 = vunpack.c.h.b16 %v1138
    %v1926 = vunpack.c.l.b16 %v1139
    %v1927 = vunpack.c.h.b16 %v1139
    %v1928 = vunpack.c.l.b16 %v1140
    %v1929 = vunpack.c.h.b16 %v1140
    %v1930 = vunpack.c.l.b16 %v1141
    %v1931 = vunpack.c.h.b16 %v1141
    %v1932 = vpack.c.b16 %v1424, %v1420
    %v1933 = vpack.c.b16 %v1425, %v1421
    %v1934 = vpack.c.b16 %v1426, %v1422
    %v1935 = vpack.c.b16 %v1427, %v1423
    %v1936 = vpack.c.b16 %v1432, %v1428
    %v1937 = vpack.c.b16 %v1433, %v1429
    %v1938 = vpack.c.b16 %v1434, %v1430
    %v1939 = vpack.c.b16 %v1435, %v1431
    %v1940 = vpack.c.b16 %v1440, %v1436
    %v1941 = vpack.c.b16 %v1441, %v1437
    %v1942 = vpack.c.b16 %v1442, %v1438
    %v1943 = vpack.c.b16 %v1443, %v1439
    %v1944 = vpack.c.b16 %v1448, %v1444
    %v1945 = vpack.c.b16 %v1449, %v1445
    %v1946 = vpack.c.b16 %v1450, %v1446
    %v1947 = vpack.c.b16 %v1451, %v1447
    %v1948 = vpack.c.b16 %v1456, %v1452
    %v1949 = vpack.c.b16 %v1457, %v1453
    %v1950 = vpack.c.b16 %v1458, %v1454
    %v1951 = vpack.c.b16 %v1459, %v1455
    %v1952 = vpack.c.b16 %v1464, %v1460
    %v1953 = vpack.c.b16 %v1465, %v1461
    %v1954 = vpack.c.b16 %v1466, %v1462
    %v1955 = vpack.c.b16 %v1467, %v1463
    %v1956 = vpack.c.b16 %v1472, %v1468
    %v1957 = vpack.c.b16 %v1473, %v1469
    %v1958 = vpack.c.b16 %v1474, %v1470
    %v1959 = vpack.c.b16 %v1475, %v1471
    %v1960 = vpack.c.b16 %v1480, %v1476
    %v1961 = vpack.c.b16 %v1481, %v1477
    %v1962 = vpack.c.b16 %v1482, %v1478
    %v1963 = vpack.c.b16 %v1483, %v1479
    %v1964 = vpack.c.b16 %v1488, %v1484
    %v1965 = vpack.c.b16 %v1489, %v1485
    %v1966 = vpack.c.b16 %v1490, %v1486
    %v1967 = vpack.c.b16 %v1491, %v1487
    %v1968 = vpack.c.b16 %v1496, %v1492
    %v1969 = vpack.c.b16 %v1497, %v1493
    %v1970 = vpack.c.b16 %v1498, %v1494
    %v1971 = vpack.c.b16 %v1499, %v1495
    %v1972 = vpack.c.b16 %v1504, %v1500
    %v1973 = vpack.c.b16 %v1505, %v1501
    %v1974 = vpack.c.b16 %v1506, %v1502
    %v1975 = vpack.c.b16 %v1507, %v1503
    %v1976 = vpack.c.b16 %v1512, %v1508
    %v1977 = vpack.c.b16 %v1513, %v1509
    %v1978 = vpack.c.b16 %v1514, %v1510
    %v1979 = vpack.c.b16 %v1515, %v1511
    %v1980 = vpack.c.b16 %v1520, %v1516
    %v1981 = vpack.c.b16 %v1521, %v1517
    %v1982 = vpack.c.b16 %v1522, %v1518
    %v1983 = vpack.c.b16 %v1523, %v1519
    %v1984 = vpack.c.b16 %v1528, %v1524
    %v1985 = vpack.c.b16 %v1529, %v1525
    %v1986 = vpack.c.b16 %v1530, %v1526
    %v1987 = vpack.c.b16 %v1531, %v1527
    %v1988 = vpack.c.b16 %v1536, %v1532
    %v1989 = vpack.c.b16 %v1537, %v1533
    %v1990 = vpack.c.b16 %v1538, %v1534
    %v1991 = vpack.c.b16 %v1539, %v1535
    %v1992 = vpack.c.b16 %v1544, %v1540
    %v1993 = vpack.c.b16 %v1545, %v1541
    %v1994 = vpack.c.b16 %v1546, %v1542
    %v1995 = vpack.c.b16 %v1547, %v1543
    %v1996 = vpack.c.b16 %v1552, %v1548
    %v1997 = vpack.c.b16 %v1553, %v1549
    %v1998 = vpack.c.b16 %v1554, %v1550
    %v1999 = vpack.c.b16 %v1555, %v1551
    %v2000 = vpack.c.b16 %v1560, %v1556
    %v2001 = vpack.c.b16 %v1561, %v1557
    %v2002 = vpack.c.b16 %v1562, %v1558
    %v2003 = vpack.c.b16 %v1563, %v1559
    %v2004 = vpack.c.b16 %v1568, %v1564
    %v2005 = vpack.c.b16 %v1569, %v1565
    %v2006 = vpack.c.b16 %v1570, %v1566
    %v2007 = vpack.c.b16 %v1571, %v1567
    %v2008 = vpack.c.b16 %v1576, %v1572
    %v2009 = vpack.c.b16 %v1577, %v1573
    %v2010 = vpack.c.b16 %v1578, %v1574
    %v2011 = vpack.c.b16 %v1579, %v1575
    %v2012 = vpack.c.b16 %v1584, %v1580
    %v2013 = vpack.c.b16 %v1585, %v1581
    %v2014 = vpack.c.b16 %v1586, %v1582
    %v2015 = vpack.c.b16 %v1587, %v1583
    %v2016 = vpack.c.b16 %v1592, %v1588
    %v2017 = vpack.c.b16 %v1593, %v1589
    %v2018 = vpack.c.b16 %v1594, %v1590
    %v2019 = vpack.c.b16 %v1595, %v1591
    %v2020 = vpack.c.b16 %v1600, %v1596
    %v2021 = vpack.c.b16 %v1601, %v1597
    %v2022 = vpack.c.b16 %v1602, %v1598
    %v2023 = vpack.c.b16 %v1603, %v1599
    %v2024 = vpack.c.b16 %v1608, %v1604
    %v2025 = vpack.c.b16 %v1609, %v1605
    %v2026 = vpack.c.b16 %v1610, %v1606
    %v2027 = vpack.c.b16 %v1611, %v1607
    %v2028 = vpack.c.b16 %v1616, %v1612
    %v2029 = vpack.c.b16 %v1617, %v1613
    %v2030 = vpack.c.b16 %v1618, %v1614
    %v2031 = vpack.c.b16 %v1619, %v1615
    %v2032 = vpack.c.b16 %v1624, %v1620
    %v2033 = vpack.c.b16 %v1625, %v1621
    %v2034 = vpack.c.b16 %v1626, %v1622
    %v2035 = vpack.c.b16 %v1627, %v1623
    %v2036 = vpack.c.b16 %v1632, %v1628
    %v2037 = vpack.c.b16 %v1633, %v1629
    %v2038 = vpack.c.b16 %v1634, %v1630
    %v2039 = vpack.c.b16 %v1635, %v1631
    %v2040 = vpack.c.b16 %v1640, %v1636
    %v2041 = vpack.c.b16 %v1641, %v1637
    %v2042 = vpack.c.b16 %v1642, %v1638
    %v2043 = vpack.c.b16 %v1643, %v1639
    %v2044 = vpack.c.b16 %v1648, %v1644
    %v2045 = vpack.c.b16 %v1649, %v1645
    %v2046 = vpack.c.b16 %v1650, %v1646
    %v2047 = vpack.c.b16 %v1651, %v1647
    %v2048 = vpack.c.b16 %v1656, %v1652
    %v2049 = vpack.c.b16 %v1657, %v1653
    %v2050 = vpack.c.b16 %v1658, %v1654
    %v2051 = vpack.c.b16 %v1659, %v1655
    %v2052 = vpack.c.b16 %v1664, %v1660
    %v2053 = vpack.c.b16 %v1665, %v1661
    %v2054 = vpack.c.b16 %v1666, %v1662
    %v2055 = vpack.c.b16 %v1667, %v1663
    %v2056 = vpack.c.b16 %v1672, %v1668
    %v2057 = vpack.c.b16 %v1673, %v1669
    %v2058 = vpack.c.b16 %v1674, %v1670
    %v2059 = vpack.c.b16 %v1675, %v1671
    %v2060 = vpack.c.b16 %v1680, %v1676
    %v2061 = vpack.c.b16 %v1681, %v1677
    %v2062 = vpack.c.b16 %v1682, %v1678
    %v2063 = vpack.c.b16 %v1683, %v1679
    %v2064 = vpack.c.b16 %v1688, %v1684
    %v2065 = vpack.c.b16 %v1689, %v1685
    %v2066 = vpack.c.b16 %v1690, %v1686
    %v2067 = vpack.c.b16 %v1691, %v1687
    %v2068 = vpack.c.b16 %v1696, %v1692
    %v2069 = vpack.c.b16 %v1697, %v1693
    %v2070 = vpack.c.b16 %v1698, %v1694
    %v2071 = vpack.c.b16 %v1699, %v1695
    %v2072 = vpack.c.b16 %v1704, %v1700
    %v2073 = vpack.c.b16 %v1705, %v1701
    %v2074 = vpack.c.b16 %v1706, %v1702
    %v2075 = vpack.c.b16 %v1707, %v1703
    %v2076 = vpack.c.b16 %v1712, %v1708
    %v2077 = vpack.c.b16 %v1713, %v1709
    %v2078 = vpack.c.b16 %v1714, %v1710
    %v2079 = vpack.c.b16 %v1715, %v1711
    %v2080 = vpack.c.b16 %v1720, %v1716
    %v2081 = vpack.c.b16 %v1721, %v1717
    %v2082 = vpack.c.b16 %v1722, %v1718
    %v2083 = vpack.c.b16 %v1723, %v1719
    %v2084 = vpack.c.b16 %v1728, %v1724
    %v2085 = vpack.c.b16 %v1729, %v1725
    %v2086 = vpack.c.b16 %v1730, %v1726
    %v2087 = vpack.c.b16 %v1731, %v1727
    %v2088 = vpack.c.b16 %v1736, %v1732
    %v2089 = vpack.c.b16 %v1737, %v1733
    %v2090 = vpack.c.b16 %v1738, %v1734
    %v2091 = vpack.c.b16 %v1739, %v1735
    %v2092 = vpack.c.b16 %v1744, %v1740
    %v2093 = vpack.c.b16 %v1745, %v1741
    %v2094 = vpack.c.b16 %v1746, %v1742
    %v2095 = vpack.c.b16 %v1747, %v1743
    %v2096 = vpack.c.b16 %v1752, %v1748
    %v2097 = vpack.c.b16 %v1753, %v1749
    %v2098 = vpack.c.b16 %v1754, %v1750
    %v2099 = vpack.c.b16 %v1755, %v1751
    %v2100 = vpack.c.b16 %v1760, %v1756
    %v2101 = vpack.c.b16 %v1761, %v1757
    %v2102 = vpack.c.b16 %v1762, %v1758
    %v2103 = vpack.c.b16 %v1763, %v1759
    %v2104 = vpack.c.b16 %v1768, %v1764
    %v2105 = vpack.c.b16 %v1769, %v1765
    %v2106 = vpack.c.b16 %v1770, %v1766
    %v2107 = vpack.c.b16 %v1771, %v1767
    %v2108 = vpack.c.b16 %v1776, %v1772
    %v2109 = vpack.c.b16 %v1777, %v1773
    %v2110 = vpack.c.b16 %v1778, %v1774
    %v2111 = vpack.c.b16 %v1779, %v1775
    %v2112 = vpack.c.b16 %v1784, %v1780
    %v2113 = vpack.c.b16 %v1785, %v1781
    %v2114 = vpack.c.b16 %v1786, %v1782
    %v2115 = vpack.c.b16 %v1787, %v1783
    %v2116 = vpack.c.b16 %v1792, %v1788
    %v2117 = vpack.c.b16 %v1793, %v1789
    %v2118 = vpack.c.b16 %v1794, %v1790
    %v2119 = vpack.c.b16 %v1795, %v1791
    %v2120 = vpack.c.b16 %v1800, %v1796
    %v2121 = vpack.c.b16 %v1801, %v1797
    %v2122 = vpack.c.b16 %v1802, %v1798
    %v2123 = vpack.c.b16 %v1803, %v1799
    %v2124 = vpack.c.b16 %v1808, %v1804
    %v2125 = vpack.c.b16 %v1809, %v1805
    %v2126 = vpack.c.b16 %v1810, %v1806
    %v2127 = vpack.c.b16 %v1811, %v1807
    %v2128 = vpack.c.b16 %v1816, %v1812
    %v2129 = vpack.c.b16 %v1817, %v1813
    %v2130 = vpack.c.b16 %v1818, %v1814
    %v2131 = vpack.c.b16 %v1819, %v1815
    %v2132 = vpack.c.b16 %v1824, %v1820
    %v2133 = vpack.c.b16 %v1825, %v1821
    %v2134 = vpack.c.b16 %v1826, %v1822
    %v2135 = vpack.c.b16 %v1827, %v1823
    %v2136 = vpack.c.b16 %v1832, %v1828
    %v2137 = vpack.c.b16 %v1833, %v1829
    %v2138 = vpack.c.b16 %v1834, %v1830
    %v2139 = vpack.c.b16 %v1835, %v1831
    %v2140 = vpack.c.b16 %v1840, %v1836
    %v2141 = vpack.c.b16 %v1841, %v1837
    %v2142 = vpack.c.b16 %v1842, %v1838
    %v2143 = vpack.c.b16 %v1843, %v1839
    %v2144 = vpack.c.b16 %v1848, %v1844
    %v2145 = vpack.c.b16 %v1849, %v1845
    %v2146 = vpack.c.b16 %v1850, %v1846
    %v2147 = vpack.c.b16 %v1851, %v1847
    %v2148 = vpack.c.b16 %v1856, %v1852
    %v2149 = vpack.c.b16 %v1857, %v1853
    %v2150 = vpack.c.b16 %v1858, %v1854
    %v2151 = vpack.c.b16 %v1859, %v1855
    %v2152 = vpack.c.b16 %v1864, %v1860
    %v2153 = vpack.c.b16 %v1865, %v1861
    %v2154 = vpack.c.b16 %v1866, %v1862
    %v2155 = vpack.c.b16 %v1867, %v1863
    %v2156 = vpack.c.b16 %v1872, %v1868
    %v2157 = vpack.c.b16 %v1873, %v1869
    %v2158 = vpack.c.b16 %v1874, %v1870
    %v2159 = vpack.c.b16 %v1875, %v1871
    %v2160 = vpack.c.b16 %v1880, %v1876
    %v2161 = vpack.c.b16 %v1881, %v1877
    %v2162 = vpack.c.b16 %v1882, %v1878
    %v2163 = vpack.c.b16 %v1883, %v1879
    %v2164 = vpack.c.b16 %v1888, %v1884
    %v2165 = vpack.c.b16 %v1889, %v1885
    %v2166 = vpack.c.b16 %v1890, %v1886
    %v2167 = vpack.c.b16 %v1891, %v1887
    %v2168 = vpack.c.b16 %v1896, %v1892
    %v2169 = vpack.c.b16 %v1897, %v1893
    %v2170 = vpack.c.b16 %v1898, %v1894
    %v2171 = vpack.c.b16 %v1899, %v1895
    %v2172 = vpack.c.b16 %v1904, %v1900
    %v2173 = vpack.c.b16 %v1905, %v1901
    %v2174 = vpack.c.b16 %v1906, %v1902
    %v2175 = vpack.c.b16 %v1907, %v1903
    %v2176 = vpack.c.b16 %v1912, %v1908
    %v2177 = vpack.c.b16 %v1913, %v1909
    %v2178 = vpack.c.b16 %v1914, %v1910
    %v2179 = vpack.c.b16 %v1915, %v1911
    %v2180 = vpack.c.b16 %v1920, %v1916
    %v2181 = vpack.c.b16 %v1921, %v1917
    %v2182 = vpack.c.b16 %v1922, %v1918
    %v2183 = vpack.c.b16 %v1923, %v1919
    %v2184 = vpack.c.b16 %v1928, %v1924
    %v2185 = vpack.c.b16 %v1929, %v1925
    %v2186 = vpack.c.b16 %v1930, %v1926
    %v2187 = vpack.c.b16 %v1931, %v1927
    %2444 = vmatprep.subr.bf16.mxu0 %v1933
    %2445 = vmatpush1.bf16.msra.mxu0 %v1932
    %2446 = vmatprep.subr.bf16.mxu0 %v1937
    %2447 = vmatpush1.bf16.msra.mxu0 %v1936
    %2448 = vmatprep.subr.bf16.mxu0 %v1941
    %2449 = vmatpush1.bf16.msra.mxu0 %v1940
    %2450 = vmatprep.subr.bf16.mxu0 %v1945
    %2451 = vmatpush1.bf16.msra.mxu0 %v1944
    %2452 = vmatprep.subr.bf16.mxu0 %v1949
    %2453 = vmatpush1.bf16.msra.mxu0 %v1948
    %2454 = vmatprep.subr.bf16.mxu0 %v1953
    %2455 = vmatpush1.bf16.msra.mxu0 %v1952
    %2456 = vmatprep.subr.bf16.mxu0 %v1957
    %2457 = vmatpush1.bf16.msra.mxu0 %v1956
    %2458 = vmatprep.subr.bf16.mxu0 %v1961
    %2459 = vmatpush1.bf16.msra.mxu0 %v1960
    %2460 = vmatprep.subr.bf16.mxu0 %v1965
    %2461 = vmatpush1.bf16.msra.mxu0 %v1964
    %2462 = vmatprep.subr.bf16.mxu0 %v1969
    %2463 = vmatpush1.bf16.msra.mxu0 %v1968
    %2464 = vmatprep.subr.bf16.mxu0 %v1973
    %2465 = vmatpush1.bf16.msra.mxu0 %v1972
    %2466 = vmatprep.subr.bf16.mxu0 %v1977
    %2467 = vmatpush1.bf16.msra.mxu0 %v1976
    %2468 = vmatprep.subr.bf16.mxu0 %v1981
    %2469 = vmatpush1.bf16.msra.mxu0 %v1980
    %2470 = vmatprep.subr.bf16.mxu0 %v1985
    %2471 = vmatpush1.bf16.msra.mxu0 %v1984
    %2472 = vmatprep.subr.bf16.mxu0 %v1989
    %2473 = vmatpush1.bf16.msra.mxu0 %v1988
    %2474 = vmatprep.subr.bf16.mxu0 %v1993
    %2475 = vmatpush1.bf16.msra.mxu0 %v1992
    %2476 = vmatprep.mubr.bf16.mxu0 %v879
    %2477 = vmatmul.mubr.bf16.gmra.mrb[0].mxu0 %v878
    %v2478 = vpop.f32.mrb[0].mxu0
    %v2479 = vadd.f32 %v1147, %v2478
    %v2480 = vpop.f32.mrb[0].mxu0
    %v2481 = vadd.f32 %v1151, %v2480
    %v2482 = vpop.f32.mrb[0].mxu0
    %v2483 = vpop.f32.mrb[0].mxu0
    %2484 = vdwg.mxu0
    %2485 = vmatprep.subr.bf16.mxu0 %v1997
    %2486 = vmatpush1.bf16.msra.mxu0 %v1996
    %2487 = vmatprep.subr.bf16.mxu0 %v2001
    %2488 = vmatpush1.bf16.msra.mxu0 %v2000
    %2489 = vmatprep.subr.bf16.mxu0 %v2005
    %2490 = vmatpush1.bf16.msra.mxu0 %v2004
    %2491 = vmatprep.subr.bf16.mxu0 %v2009
    %2492 = vmatpush1.bf16.msra.mxu0 %v2008
    %2493 = vmatprep.subr.bf16.mxu0 %v2013
    %2494 = vmatpush1.bf16.msra.mxu0 %v2012
    %2495 = vmatprep.subr.bf16.mxu0 %v2017
    %2496 = vmatpush1.bf16.msra.mxu0 %v2016
    %2497 = vmatprep.subr.bf16.mxu0 %v2021
    %2498 = vmatpush1.bf16.msra.mxu0 %v2020
    %2499 = vmatprep.subr.bf16.mxu0 %v2025
    %2500 = vmatpush1.bf16.msra.mxu0 %v2024
    %2501 = vmatprep.subr.bf16.mxu0 %v2029
    %2502 = vmatpush1.bf16.msra.mxu0 %v2028
    %2503 = vmatprep.subr.bf16.mxu0 %v2033
    %2504 = vmatpush1.bf16.msra.mxu0 %v2032
    %2505 = vmatprep.subr.bf16.mxu0 %v2037
    %2506 = vmatpush1.bf16.msra.mxu0 %v2036
    %2507 = vmatprep.subr.bf16.mxu0 %v2041
    %2508 = vmatpush1.bf16.msra.mxu0 %v2040
    %2509 = vmatprep.subr.bf16.mxu0 %v2045
    %2510 = vmatpush1.bf16.msra.mxu0 %v2044
    %2511 = vmatprep.subr.bf16.mxu0 %v2049
    %2512 = vmatpush1.bf16.msra.mxu0 %v2048
    %2513 = vmatprep.subr.bf16.mxu0 %v2053
    %2514 = vmatpush1.bf16.msra.mxu0 %v2052
    %2515 = vmatprep.subr.bf16.mxu0 %v2057
    %2516 = vmatpush1.bf16.msra.mxu0 %v2056
    %2517 = vmatprep.mubr.bf16.mxu0 %v881
    %2518 = vmatmul.mubr.bf16.gmra.mrb[0].mxu0 %v880
    %v2519 = vpop.f32.mrb[0].mxu0
    %v2520 = vadd.f32 %v2479, %v2519
    %v2521 = vpop.f32.mrb[0].mxu0
    %v2522 = vadd.f32 %v2481, %v2521
    %v2523 = vpop.f32.mrb[0].mxu0
    %v2524 = vpop.f32.mrb[0].mxu0
    %2525 = vdwg.mxu0
    %2526 = vmatprep.subr.bf16.mxu0 %v2061
    %2527 = vmatpush1.bf16.msra.mxu0 %v2060
    %2528 = vmatprep.subr.bf16.mxu0 %v2065
    %2529 = vmatpush1.bf16.msra.mxu0 %v2064
    %2530 = vmatprep.subr.bf16.mxu0 %v2069
    %2531 = vmatpush1.bf16.msra.mxu0 %v2068
    %2532 = vmatprep.subr.bf16.mxu0 %v2073
    %2533 = vmatpush1.bf16.msra.mxu0 %v2072
    %2534 = vmatprep.subr.bf16.mxu0 %v2077
    %2535 = vmatpush1.bf16.msra.mxu0 %v2076
    %2536 = vmatprep.subr.bf16.mxu0 %v2081
    %2537 = vmatpush1.bf16.msra.mxu0 %v2080
    %2538 = vmatprep.subr.bf16.mxu0 %v2085
    %2539 = vmatpush1.bf16.msra.mxu0 %v2084
    %2540 = vmatprep.subr.bf16.mxu0 %v2089
    %2541 = vmatpush1.bf16.msra.mxu0 %v2088
    %2542 = vmatprep.subr.bf16.mxu0 %v2093
    %2543 = vmatpush1.bf16.msra.mxu0 %v2092
    %2544 = vmatprep.subr.bf16.mxu0 %v2097
    %2545 = vmatpush1.bf16.msra.mxu0 %v2096
    %2546 = vmatprep.subr.bf16.mxu0 %v2101
    %2547 = vmatpush1.bf16.msra.mxu0 %v2100
    %2548 = vmatprep.subr.bf16.mxu0 %v2105
    %2549 = vmatpush1.bf16.msra.mxu0 %v2104
    %2550 = vmatprep.subr.bf16.mxu0 %v2109
    %2551 = vmatpush1.bf16.msra.mxu0 %v2108
    %2552 = vmatprep.subr.bf16.mxu0 %v2113
    %2553 = vmatpush1.bf16.msra.mxu0 %v2112
    %2554 = vmatprep.subr.bf16.mxu0 %v2117
    %2555 = vmatpush1.bf16.msra.mxu0 %v2116
    %2556 = vmatprep.subr.bf16.mxu0 %v2121
    %2557 = vmatpush1.bf16.msra.mxu0 %v2120
    %2558 = vmatprep.mubr.bf16.mxu0 %v883
    %2559 = vmatmul.mubr.bf16.gmra.mrb[0].mxu0 %v882
    %v2560 = vpop.f32.mrb[0].mxu0
    %v2561 = vadd.f32 %v2520, %v2560
    %v2562 = vpop.f32.mrb[0].mxu0
    %v2563 = vadd.f32 %v2522, %v2562
    %v2564 = vpop.f32.mrb[0].mxu0
    %v2565 = vpop.f32.mrb[0].mxu0
    %2566 = vdwg.mxu0
    %2567 = vmatprep.subr.bf16.mxu0 %v2125
    %2568 = vmatpush1.bf16.msra.mxu0 %v2124
    %2569 = vmatprep.subr.bf16.mxu0 %v2129
    %2570 = vmatpush1.bf16.msra.mxu0 %v2128
    %2571 = vmatprep.subr.bf16.mxu0 %v2133
    %2572 = vmatpush1.bf16.msra.mxu0 %v2132
    %2573 = vmatprep.subr.bf16.mxu0 %v2137
    %2574 = vmatpush1.bf16.msra.mxu0 %v2136
    %2575 = vmatprep.subr.bf16.mxu0 %v2141
    %2576 = vmatpush1.bf16.msra.mxu0 %v2140
    %2577 = vmatprep.subr.bf16.mxu0 %v2145
    %2578 = vmatpush1.bf16.msra.mxu0 %v2144
    %2579 = vmatprep.subr.bf16.mxu0 %v2149
    %2580 = vmatpush1.bf16.msra.mxu0 %v2148
    %2581 = vmatprep.subr.bf16.mxu0 %v2153
    %2582 = vmatpush1.bf16.msra.mxu0 %v2152
    %2583 = vmatprep.subr.bf16.mxu0 %v2157
    %2584 = vmatpush1.bf16.msra.mxu0 %v2156
    %2585 = vmatprep.subr.bf16.mxu0 %v2161
    %2586 = vmatpush1.bf16.msra.mxu0 %v2160
    %2587 = vmatprep.subr.bf16.mxu0 %v2165
    %2588 = vmatpush1.bf16.msra.mxu0 %v2164
    %2589 = vmatprep.subr.bf16.mxu0 %v2169
    %2590 = vmatpush1.bf16.msra.mxu0 %v2168
    %2591 = vmatprep.subr.bf16.mxu0 %v2173
    %2592 = vmatpush1.bf16.msra.mxu0 %v2172
    %2593 = vmatprep.subr.bf16.mxu0 %v2177
    %2594 = vmatpush1.bf16.msra.mxu0 %v2176
    %2595 = vmatprep.subr.bf16.mxu0 %v2181
    %2596 = vmatpush1.bf16.msra.mxu0 %v2180
    %2597 = vmatprep.subr.bf16.mxu0 %v2185
    %2598 = vmatpush1.bf16.msra.mxu0 %v2184
    %2599 = vmatprep.mubr.bf16.mxu0 %v885
    %2600 = vmatmul.mubr.bf16.gmra.mrb[0].mxu0 %v884
    %v2601 = vpop.f32.mrb[0].mxu0
    %v2602 = vadd.f32 %v2561, %v2601
    %v2603 = vpop.f32.mrb[0].mxu0
    %v2604 = vadd.f32 %v2563, %v2603
    %v2605 = vpop.f32.mrb[0].mxu0
    %v2606 = vpop.f32.mrb[0].mxu0
    %2607 = vdwg.mxu0
    %2608 = vmatprep.subr.bf16.mxu0 %v1935
    %2609 = vmatpush1.bf16.msra.mxu0 %v1934
    %2610 = vmatprep.subr.bf16.mxu0 %v1939
    %2611 = vmatpush1.bf16.msra.mxu0 %v1938
    %2612 = vmatprep.subr.bf16.mxu0 %v1943
    %2613 = vmatpush1.bf16.msra.mxu0 %v1942
    %2614 = vmatprep.subr.bf16.mxu0 %v1947
    %2615 = vmatpush1.bf16.msra.mxu0 %v1946
    %2616 = vmatprep.subr.bf16.mxu0 %v1951
    %2617 = vmatpush1.bf16.msra.mxu0 %v1950
    %2618 = vmatprep.subr.bf16.mxu0 %v1955
    %2619 = vmatpush1.bf16.msra.mxu0 %v1954
    %2620 = vmatprep.subr.bf16.mxu0 %v1959
    %2621 = vmatpush1.bf16.msra.mxu0 %v1958
    %2622 = vmatprep.subr.bf16.mxu0 %v1963
    %2623 = vmatpush1.bf16.msra.mxu0 %v1962
    %2624 = vmatprep.subr.bf16.mxu0 %v1967
    %2625 = vmatpush1.bf16.msra.mxu0 %v1966
    %2626 = vmatprep.subr.bf16.mxu0 %v1971
    %2627 = vmatpush1.bf16.msra.mxu0 %v1970
    %2628 = vmatprep.subr.bf16.mxu0 %v1975
    %2629 = vmatpush1.bf16.msra.mxu0 %v1974
    %2630 = vmatprep.subr.bf16.mxu0 %v1979
    %2631 = vmatpush1.bf16.msra.mxu0 %v1978
    %2632 = vmatprep.subr.bf16.mxu0 %v1983
    %2633 = vmatpush1.bf16.msra.mxu0 %v1982
    %2634 = vmatprep.subr.bf16.mxu0 %v1987
    %2635 = vmatpush1.bf16.msra.mxu0 %v1986
    %2636 = vmatprep.subr.bf16.mxu0 %v1991
    %2637 = vmatpush1.bf16.msra.mxu0 %v1990
    %2638 = vmatprep.subr.bf16.mxu0 %v1995
    %2639 = vmatpush1.bf16.msra.mxu0 %v1994
    %2640 = vmatprep.mubr.bf16.mxu0 %v879
    %2641 = vmatmul.mubr.bf16.gmra.mrb[0].mxu0 %v878
    %v2642 = vpop.f32.mrb[0].mxu0
    %v2643 = vadd.f32 %v1155, %v2642
    %v2644 = vpop.f32.mrb[0].mxu0
    %v2645 = vadd.f32 %v1159, %v2644
    %v2646 = vpop.f32.mrb[0].mxu0
    %v2647 = vpop.f32.mrb[0].mxu0
    %2648 = vdwg.mxu0
    %2649 = vmatprep.subr.bf16.mxu0 %v1999
    %2650 = vmatpush1.bf16.msra.mxu0 %v1998
    %2651 = vmatprep.subr.bf16.mxu0 %v2003
    %2652 = vmatpush1.bf16.msra.mxu0 %v2002
    %2653 = vmatprep.subr.bf16.mxu0 %v2007
    %2654 = vmatpush1.bf16.msra.mxu0 %v2006
    %2655 = vmatprep.subr.bf16.mxu0 %v2011
    %2656 = vmatpush1.bf16.msra.mxu0 %v2010
    %2657 = vmatprep.subr.bf16.mxu0 %v2015
    %2658 = vmatpush1.bf16.msra.mxu0 %v2014
    %2659 = vmatprep.subr.bf16.mxu0 %v2019
    %2660 = vmatpush1.bf16.msra.mxu0 %v2018
    %2661 = vmatprep.subr.bf16.mxu0 %v2023
    %2662 = vmatpush1.bf16.msra.mxu0 %v2022
    %2663 = vmatprep.subr.bf16.mxu0 %v2027
    %2664 = vmatpush1.bf16.msra.mxu0 %v2026
    %2665 = vmatprep.subr.bf16.mxu0 %v2031
    %2666 = vmatpush1.bf16.msra.mxu0 %v2030
    %2667 = vmatprep.subr.bf16.mxu0 %v2035
    %2668 = vmatpush1.bf16.msra.mxu0 %v2034
    %2669 = vmatprep.subr.bf16.mxu0 %v2039
    %2670 = vmatpush1.bf16.msra.mxu0 %v2038
    %2671 = vmatprep.subr.bf16.mxu0 %v2043
    %2672 = vmatpush1.bf16.msra.mxu0 %v2042
    %2673 = vmatprep.subr.bf16.mxu0 %v2047
    %2674 = vmatpush1.bf16.msra.mxu0 %v2046
    %2675 = vmatprep.subr.bf16.mxu0 %v2051
    %2676 = vmatpush1.bf16.msra.mxu0 %v2050
    %2677 = vmatprep.subr.bf16.mxu0 %v2055
    %2678 = vmatpush1.bf16.msra.mxu0 %v2054
    %2679 = vmatprep.subr.bf16.mxu0 %v2059
    %2680 = vmatpush1.bf16.msra.mxu0 %v2058
    %2681 = vmatprep.mubr.bf16.mxu0 %v881
    %2682 = vmatmul.mubr.bf16.gmra.mrb[0].mxu0 %v880
    %v2683 = vpop.f32.mrb[0].mxu0
    %v2684 = vadd.f32 %v2643, %v2683
    %v2685 = vpop.f32.mrb[0].mxu0
    %v2686 = vadd.f32 %v2645, %v2685
    %v2687 = vpop.f32.mrb[0].mxu0
    %v2688 = vpop.f32.mrb[0].mxu0
    %2689 = vdwg.mxu0
    %2690 = vmatprep.subr.bf16.mxu0 %v2063
    %2691 = vmatpush1.bf16.msra.mxu0 %v2062
    %2692 = vmatprep.subr.bf16.mxu0 %v2067
    %2693 = vmatpush1.bf16.msra.mxu0 %v2066
    %2694 = vmatprep.subr.bf16.mxu0 %v2071
    %2695 = vmatpush1.bf16.msra.mxu0 %v2070
    %2696 = vmatprep.subr.bf16.mxu0 %v2075
    %2697 = vmatpush1.bf16.msra.mxu0 %v2074
    %2698 = vmatprep.subr.bf16.mxu0 %v2079
    %2699 = vmatpush1.bf16.msra.mxu0 %v2078
    %2700 = vmatprep.subr.bf16.mxu0 %v2083
    %2701 = vmatpush1.bf16.msra.mxu0 %v2082
    %2702 = vmatprep.subr.bf16.mxu0 %v2087
    %2703 = vmatpush1.bf16.msra.mxu0 %v2086
    %2704 = vmatprep.subr.bf16.mxu0 %v2091
    %2705 = vmatpush1.bf16.msra.mxu0 %v2090
    %2706 = vmatprep.subr.bf16.mxu0 %v2095
    %2707 = vmatpush1.bf16.msra.mxu0 %v2094
    %2708 = vmatprep.subr.bf16.mxu0 %v2099
    %2709 = vmatpush1.bf16.msra.mxu0 %v2098
    %2710 = vmatprep.subr.bf16.mxu0 %v2103
    %2711 = vmatpush1.bf16.msra.mxu0 %v2102
    %2712 = vmatprep.subr.bf16.mxu0 %v2107
    %2713 = vmatpush1.bf16.msra.mxu0 %v2106
    %2714 = vmatprep.subr.bf16.mxu0 %v2111
    %2715 = vmatpush1.bf16.msra.mxu0 %v2110
    %2716 = vmatprep.subr.bf16.mxu0 %v2115
    %2717 = vmatpush1.bf16.msra.mxu0 %v2114
    %2718 = vmatprep.subr.bf16.mxu0 %v2119
    %2719 = vmatpush1.bf16.msra.mxu0 %v2118
    %2720 = vmatprep.subr.bf16.mxu0 %v2123
    %2721 = vmatpush1.bf16.msra.mxu0 %v2122
    %2722 = vmatprep.mubr.bf16.mxu0 %v883
    %2723 = vmatmul.mubr.bf16.gmra.mrb[0].mxu0 %v882
    %v2724 = vpop.f32.mrb[0].mxu0
    %v2725 = vadd.f32 %v2684, %v2724
    %v2726 = vpop.f32.mrb[0].mxu0
    %v2727 = vadd.f32 %v2686, %v2726
    %v2728 = vpop.f32.mrb[0].mxu0
    %v2729 = vpop.f32.mrb[0].mxu0
    %2730 = vdwg.mxu0
    %2731 = vmatprep.subr.bf16.mxu0 %v2127
    %2732 = vmatpush1.bf16.msra.mxu0 %v2126
    %2733 = vmatprep.subr.bf16.mxu0 %v2131
    %2734 = vmatpush1.bf16.msra.mxu0 %v2130
    %2735 = vmatprep.subr.bf16.mxu0 %v2135
    %2736 = vmatpush1.bf16.msra.mxu0 %v2134
    %2737 = vmatprep.subr.bf16.mxu0 %v2139
    %2738 = vmatpush1.bf16.msra.mxu0 %v2138
    %2739 = vmatprep.subr.bf16.mxu0 %v2143
    %2740 = vmatpush1.bf16.msra.mxu0 %v2142
    %2741 = vmatprep.subr.bf16.mxu0 %v2147
    %2742 = vmatpush1.bf16.msra.mxu0 %v2146
    %2743 = vmatprep.subr.bf16.mxu0 %v2151
    %2744 = vmatpush1.bf16.msra.mxu0 %v2150
    %2745 = vmatprep.subr.bf16.mxu0 %v2155
    %2746 = vmatpush1.bf16.msra.mxu0 %v2154
    %2747 = vmatprep.subr.bf16.mxu0 %v2159
    %2748 = vmatpush1.bf16.msra.mxu0 %v2158
    %2749 = vmatprep.subr.bf16.mxu0 %v2163
    %2750 = vmatpush1.bf16.msra.mxu0 %v2162
    %2751 = vmatprep.subr.bf16.mxu0 %v2167
    %2752 = vmatpush1.bf16.msra.mxu0 %v2166
    %2753 = vmatprep.subr.bf16.mxu0 %v2171
    %2754 = vmatpush1.bf16.msra.mxu0 %v2170
    %2755 = vmatprep.subr.bf16.mxu0 %v2175
    %2756 = vmatpush1.bf16.msra.mxu0 %v2174
    %2757 = vmatprep.subr.bf16.mxu0 %v2179
    %2758 = vmatpush1.bf16.msra.mxu0 %v2178
    %2759 = vmatprep.subr.bf16.mxu0 %v2183
    %2760 = vmatpush1.bf16.msra.mxu0 %v2182
    %2761 = vmatprep.subr.bf16.mxu0 %v2187
    %2762 = vmatpush1.bf16.msra.mxu0 %v2186
    %2763 = vmatprep.mubr.bf16.mxu0 %v885
    %2764 = vmatmul.mubr.bf16.gmra.mrb[0].mxu0 %v884
    %v2765 = vpop.f32.mrb[0].mxu0
    %v2766 = vadd.f32 %v2725, %v2765
    %v2767 = vpop.f32.mrb[0].mxu0
    %v2768 = vadd.f32 %v2727, %v2767
    %v2769 = vpop.f32.mrb[0].mxu0
    %v2770 = vpop.f32.mrb[0].mxu0
    %2771 = vdwg.mxu0
    %v2772 = vmax.f32 %v2602, 0.0
    %v2773 = vmax.f32 %v2604, 0.0
    %v2774 = vmax.f32 %v2766, 0.0
    %v2775 = vmax.f32 %v2768, 0.0
    %v2776 = vpack.c.bf16 %v2772, %v2772
    %v2777 = vpack.c.bf16 %v2773, %v2773
    %v2778 = vpack.c.bf16 %v2774, %v2774
    %v2779 = vpack.c.bf16 %v2775, %v2775
    %v2780 = vld [vmem:[#allocation6] sm:$0xff]
    %v2781 = vld [vmem:[#allocation6 + $0x8] sm:$0xff]
    %v2782 = vld [vmem:[#allocation6 + $0x10] sm:$0xff]
    %v2783 = vld [vmem:[#allocation6 + $0x18] sm:$0xff]
    %v2784 = vld [vmem:[#allocation6 + $0x20] sm:$0xff]
    %v2785 = vld [vmem:[#allocation6 + $0x28] sm:$0xff]
    %v2786 = vld [vmem:[#allocation6 + $0x30] sm:$0xff]
    %v2787 = vld [vmem:[#allocation6 + $0x38] sm:$0xff]
    %v2788 = vld [vmem:[#allocation6 + $0x40] sm:$0xff]
    %v2789 = vld [vmem:[#allocation6 + $0x48] sm:$0xff]
    %v2790 = vld [vmem:[#allocation6 + $0x50] sm:$0xff]
    %v2791 = vld [vmem:[#allocation6 + $0x58] sm:$0xff]
    %v2792 = vld [vmem:[#allocation6 + $0x60] sm:$0xff]
    %v2793 = vld [vmem:[#allocation6 + $0x68] sm:$0xff]
    %v2794 = vld [vmem:[#allocation6 + $0x70] sm:$0xff]
    %v2795 = vld [vmem:[#allocation6 + $0x78] sm:$0xff]
    %v2796 = vld [vmem:[#allocation6 + $0x80] sm:$0xff]
    %v2797 = vld [vmem:[#allocation6 + $0x88] sm:$0xff]
    %v2798 = vld [vmem:[#allocation6 + $0x90] sm:$0xff]
    %v2799 = vld [vmem:[#allocation6 + $0x98] sm:$0xff]
    %v2800 = vld [vmem:[#allocation6 + $0xa0] sm:$0xff]
    %v2801 = vld [vmem:[#allocation6 + $0xa8] sm:$0xff]
    %v2802 = vld [vmem:[#allocation6 + $0xb0] sm:$0xff]
    %v2803 = vld [vmem:[#allocation6 + $0xb8] sm:$0xff]
    %v2804 = vld [vmem:[#allocation6 + $0xc0] sm:$0xff]
    %v2805 = vld [vmem:[#allocation6 + $0xc8] sm:$0xff]
    %v2806 = vld [vmem:[#allocation6 + $0xd0] sm:$0xff]
    %v2807 = vld [vmem:[#allocation6 + $0xd8] sm:$0xff]
    %v2808 = vld [vmem:[#allocation6 + $0xe0] sm:$0xff]
    %v2809 = vld [vmem:[#allocation6 + $0xe8] sm:$0xff]
    %v2810 = vld [vmem:[#allocation6 + $0xf0] sm:$0xff]
    %v2811 = vld [vmem:[#allocation6 + $0xf8] sm:$0xff]
    %v2812 = vld [vmem:[#allocation6 + $0x100] sm:$0xff]
    %v2813 = vld [vmem:[#allocation6 + $0x108] sm:$0xff]
    %v2814 = vld [vmem:[#allocation6 + $0x110] sm:$0xff]
    %v2815 = vld [vmem:[#allocation6 + $0x118] sm:$0xff]
    %v2816 = vld [vmem:[#allocation6 + $0x120] sm:$0xff]
    %v2817 = vld [vmem:[#allocation6 + $0x128] sm:$0xff]
    %v2818 = vld [vmem:[#allocation6 + $0x130] sm:$0xff]
    %v2819 = vld [vmem:[#allocation6 + $0x138] sm:$0xff]
    %v2820 = vld [vmem:[#allocation6 + $0x140] sm:$0xff]
    %v2821 = vld [vmem:[#allocation6 + $0x148] sm:$0xff]
    %v2822 = vld [vmem:[#allocation6 + $0x150] sm:$0xff]
    %v2823 = vld [vmem:[#allocation6 + $0x158] sm:$0xff]
    %v2824 = vld [vmem:[#allocation6 + $0x160] sm:$0xff]
    %v2825 = vld [vmem:[#allocation6 + $0x168] sm:$0xff]
    %v2826 = vld [vmem:[#allocation6 + $0x170] sm:$0xff]
    %v2827 = vld [vmem:[#allocation6 + $0x178] sm:$0xff]
    %v2828 = vld [vmem:[#allocation6 + $0x180] sm:$0xff]
    %v2829 = vld [vmem:[#allocation6 + $0x188] sm:$0xff]
    %v2830 = vld [vmem:[#allocation6 + $0x190] sm:$0xff]
    %v2831 = vld [vmem:[#allocation6 + $0x198] sm:$0xff]
    %v2832 = vld [vmem:[#allocation6 + $0x1a0] sm:$0xff]
    %v2833 = vld [vmem:[#allocation6 + $0x1a8] sm:$0xff]
    %v2834 = vld [vmem:[#allocation6 + $0x1b0] sm:$0xff]
    %v2835 = vld [vmem:[#allocation6 + $0x1b8] sm:$0xff]
    %v2836 = vld [vmem:[#allocation6 + $0x1c0] sm:$0xff]
    %v2837 = vld [vmem:[#allocation6 + $0x1c8] sm:$0xff]
    %v2838 = vld [vmem:[#allocation6 + $0x1d0] sm:$0xff]
    %v2839 = vld [vmem:[#allocation6 + $0x1d8] sm:$0xff]
    %v2840 = vld [vmem:[#allocation6 + $0x1e0] sm:$0xff]
    %v2841 = vld [vmem:[#allocation6 + $0x1e8] sm:$0xff]
    %v2842 = vld [vmem:[#allocation6 + $0x1f0] sm:$0xff]
    %v2843 = vld [vmem:[#allocation6 + $0x1f8] sm:$0xff]
    %v2844 = vld [vmem:[%s6] sm:$0x3]
    %v2846 = vlaneseq
    %v2847 = vshrl.u32 %v2846, 7
    %v2848 = vsub.s32 0, %v2847
    %v2849 = vrot.slane %v2844, %v2848
    %v2850 = vlaneseq
    %v2851 = vshrl.u32 %v2850, 7
    %v2852 = vsub.s32 1, %v2851
    %v2853 = vrot.slane %v2844, %v2852
    %v2920 = vunpack.c.l.b16 %v2780
    %v2921 = vunpack.c.h.b16 %v2780
    %v2922 = vunpack.c.l.b16 %v2781
    %v2923 = vunpack.c.h.b16 %v2781
    %v2924 = vunpack.c.l.b16 %v2782
    %v2925 = vunpack.c.h.b16 %v2782
    %v2926 = vunpack.c.l.b16 %v2783
    %v2927 = vunpack.c.h.b16 %v2783
    %v2928 = vunpack.c.l.b16 %v2784
    %v2929 = vunpack.c.h.b16 %v2784
    %v2930 = vunpack.c.l.b16 %v2785
    %v2931 = vunpack.c.h.b16 %v2785
    %v2932 = vunpack.c.l.b16 %v2786
    %v2933 = vunpack.c.h.b16 %v2786
    %v2934 = vunpack.c.l.b16 %v2787
    %v2935 = vunpack.c.h.b16 %v2787
    %v2936 = vunpack.c.l.b16 %v2788
    %v2937 = vunpack.c.h.b16 %v2788
    %v2938 = vunpack.c.l.b16 %v2789
    %v2939 = vunpack.c.h.b16 %v2789
    %v2940 = vunpack.c.l.b16 %v2790
    %v2941 = vunpack.c.h.b16 %v2790
    %v2942 = vunpack.c.l.b16 %v2791
    %v2943 = vunpack.c.h.b16 %v2791
    %v2944 = vunpack.c.l.b16 %v2792
    %v2945 = vunpack.c.h.b16 %v2792
    %v2946 = vunpack.c.l.b16 %v2793
    %v2947 = vunpack.c.h.b16 %v2793
    %v2948 = vunpack.c.l.b16 %v2794
    %v2949 = vunpack.c.h.b16 %v2794
    %v2950 = vunpack.c.l.b16 %v2795
    %v2951 = vunpack.c.h.b16 %v2795
    %v2952 = vunpack.c.l.b16 %v2796
    %v2953 = vunpack.c.h.b16 %v2796
    %v2954 = vunpack.c.l.b16 %v2797
    %v2955 = vunpack.c.h.b16 %v2797
    %v2956 = vunpack.c.l.b16 %v2798
    %v2957 = vunpack.c.h.b16 %v2798
    %v2958 = vunpack.c.l.b16 %v2799
    %v2959 = vunpack.c.h.b16 %v2799
    %v2960 = vunpack.c.l.b16 %v2800
    %v2961 = vunpack.c.h.b16 %v2800
    %v2962 = vunpack.c.l.b16 %v2801
    %v2963 = vunpack.c.h.b16 %v2801
    %v2964 = vunpack.c.l.b16 %v2802
    %v2965 = vunpack.c.h.b16 %v2802
    %v2966 = vunpack.c.l.b16 %v2803
    %v2967 = vunpack.c.h.b16 %v2803
    %v2968 = vunpack.c.l.b16 %v2804
    %v2969 = vunpack.c.h.b16 %v2804
    %v2970 = vunpack.c.l.b16 %v2805
    %v2971 = vunpack.c.h.b16 %v2805
    %v2972 = vunpack.c.l.b16 %v2806
    %v2973 = vunpack.c.h.b16 %v2806
    %v2974 = vunpack.c.l.b16 %v2807
    %v2975 = vunpack.c.h.b16 %v2807
    %v2976 = vunpack.c.l.b16 %v2808
    %v2977 = vunpack.c.h.b16 %v2808
    %v2978 = vunpack.c.l.b16 %v2809
    %v2979 = vunpack.c.h.b16 %v2809
    %v2980 = vunpack.c.l.b16 %v2810
    %v2981 = vunpack.c.h.b16 %v2810
    %v2982 = vunpack.c.l.b16 %v2811
    %v2983 = vunpack.c.h.b16 %v2811
    %v2984 = vunpack.c.l.b16 %v2812
    %v2985 = vunpack.c.h.b16 %v2812
    %v2986 = vunpack.c.l.b16 %v2813
    %v2987 = vunpack.c.h.b16 %v2813
    %v2988 = vunpack.c.l.b16 %v2814
    %v2989 = vunpack.c.h.b16 %v2814
    %v2990 = vunpack.c.l.b16 %v2815
    %v2991 = vunpack.c.h.b16 %v2815
    %v2992 = vunpack.c.l.b16 %v2816
    %v2993 = vunpack.c.h.b16 %v2816
    %v2994 = vunpack.c.l.b16 %v2817
    %v2995 = vunpack.c.h.b16 %v2817
    %v2996 = vunpack.c.l.b16 %v2818
    %v2997 = vunpack.c.h.b16 %v2818
    %v2998 = vunpack.c.l.b16 %v2819
    %v2999 = vunpack.c.h.b16 %v2819
    %v3000 = vunpack.c.l.b16 %v2820
    %v3001 = vunpack.c.h.b16 %v2820
    %v3002 = vunpack.c.l.b16 %v2821
    %v3003 = vunpack.c.h.b16 %v2821
    %v3004 = vunpack.c.l.b16 %v2822
    %v3005 = vunpack.c.h.b16 %v2822
    %v3006 = vunpack.c.l.b16 %v2823
    %v3007 = vunpack.c.h.b16 %v2823
    %v3008 = vunpack.c.l.b16 %v2824
    %v3009 = vunpack.c.h.b16 %v2824
    %v3010 = vunpack.c.l.b16 %v2825
    %v3011 = vunpack.c.h.b16 %v2825
    %v3012 = vunpack.c.l.b16 %v2826
    %v3013 = vunpack.c.h.b16 %v2826
    %v3014 = vunpack.c.l.b16 %v2827
    %v3015 = vunpack.c.h.b16 %v2827
    %v3016 = vunpack.c.l.b16 %v2828
    %v3017 = vunpack.c.h.b16 %v2828
    %v3018 = vunpack.c.l.b16 %v2829
    %v3019 = vunpack.c.h.b16 %v2829
    %v3020 = vunpack.c.l.b16 %v2830
    %v3021 = vunpack.c.h.b16 %v2830
    %v3022 = vunpack.c.l.b16 %v2831
    %v3023 = vunpack.c.h.b16 %v2831
    %v3024 = vunpack.c.l.b16 %v2832
    %v3025 = vunpack.c.h.b16 %v2832
    %v3026 = vunpack.c.l.b16 %v2833
    %v3027 = vunpack.c.h.b16 %v2833
    %v3028 = vunpack.c.l.b16 %v2834
    %v3029 = vunpack.c.h.b16 %v2834
    %v3030 = vunpack.c.l.b16 %v2835
    %v3031 = vunpack.c.h.b16 %v2835
    %v3032 = vunpack.c.l.b16 %v2836
    %v3033 = vunpack.c.h.b16 %v2836
    %v3034 = vunpack.c.l.b16 %v2837
    %v3035 = vunpack.c.h.b16 %v2837
    %v3036 = vunpack.c.l.b16 %v2838
    %v3037 = vunpack.c.h.b16 %v2838
    %v3038 = vunpack.c.l.b16 %v2839
    %v3039 = vunpack.c.h.b16 %v2839
    %v3040 = vunpack.c.l.b16 %v2840
    %v3041 = vunpack.c.h.b16 %v2840
    %v3042 = vunpack.c.l.b16 %v2841
    %v3043 = vunpack.c.h.b16 %v2841
    %v3044 = vunpack.c.l.b16 %v2842
    %v3045 = vunpack.c.h.b16 %v2842
    %v3046 = vunpack.c.l.b16 %v2843
    %v3047 = vunpack.c.h.b16 %v2843
    %v3048 = vpack.c.b16 %v2922, %v2920
    %v3049 = vpack.c.b16 %v2923, %v2921
    %v3050 = vpack.c.b16 %v2926, %v2924
    %v3051 = vpack.c.b16 %v2927, %v2925
    %v3052 = vpack.c.b16 %v2930, %v2928
    %v3053 = vpack.c.b16 %v2931, %v2929
    %v3054 = vpack.c.b16 %v2934, %v2932
    %v3055 = vpack.c.b16 %v2935, %v2933
    %v3056 = vpack.c.b16 %v2938, %v2936
    %v3057 = vpack.c.b16 %v2939, %v2937
    %v3058 = vpack.c.b16 %v2942, %v2940
    %v3059 = vpack.c.b16 %v2943, %v2941
    %v3060 = vpack.c.b16 %v2946, %v2944
    %v3061 = vpack.c.b16 %v2947, %v2945
    %v3062 = vpack.c.b16 %v2950, %v2948
    %v3063 = vpack.c.b16 %v2951, %v2949
    %v3064 = vpack.c.b16 %v2954, %v2952
    %v3065 = vpack.c.b16 %v2955, %v2953
    %v3066 = vpack.c.b16 %v2958, %v2956
    %v3067 = vpack.c.b16 %v2959, %v2957
    %v3068 = vpack.c.b16 %v2962, %v2960
    %v3069 = vpack.c.b16 %v2963, %v2961
    %v3070 = vpack.c.b16 %v2966, %v2964
    %v3071 = vpack.c.b16 %v2967, %v2965
    %v3072 = vpack.c.b16 %v2970, %v2968
    %v3073 = vpack.c.b16 %v2971, %v2969
    %v3074 = vpack.c.b16 %v2974, %v2972
    %v3075 = vpack.c.b16 %v2975, %v2973
    %v3076 = vpack.c.b16 %v2978, %v2976
    %v3077 = vpack.c.b16 %v2979, %v2977
    %v3078 = vpack.c.b16 %v2982, %v2980
    %v3079 = vpack.c.b16 %v2983, %v2981
    %v3080 = vpack.c.b16 %v2986, %v2984
    %v3081 = vpack.c.b16 %v2987, %v2985
    %v3082 = vpack.c.b16 %v2990, %v2988
    %v3083 = vpack.c.b16 %v2991, %v2989
    %v3084 = vpack.c.b16 %v2994, %v2992
    %v3085 = vpack.c.b16 %v2995, %v2993
    %v3086 = vpack.c.b16 %v2998, %v2996
    %v3087 = vpack.c.b16 %v2999, %v2997
    %v3088 = vpack.c.b16 %v3002, %v3000
    %v3089 = vpack.c.b16 %v3003, %v3001
    %v3090 = vpack.c.b16 %v3006, %v3004
    %v3091 = vpack.c.b16 %v3007, %v3005
    %v3092 = vpack.c.b16 %v3010, %v3008
    %v3093 = vpack.c.b16 %v3011, %v3009
    %v3094 = vpack.c.b16 %v3014, %v3012
    %v3095 = vpack.c.b16 %v3015, %v3013
    %v3096 = vpack.c.b16 %v3018, %v3016
    %v3097 = vpack.c.b16 %v3019, %v3017
    %v3098 = vpack.c.b16 %v3022, %v3020
    %v3099 = vpack.c.b16 %v3023, %v3021
    %v3100 = vpack.c.b16 %v3026, %v3024
    %v3101 = vpack.c.b16 %v3027, %v3025
    %v3102 = vpack.c.b16 %v3030, %v3028
    %v3103 = vpack.c.b16 %v3031, %v3029
    %v3104 = vpack.c.b16 %v3034, %v3032
    %v3105 = vpack.c.b16 %v3035, %v3033
    %v3106 = vpack.c.b16 %v3038, %v3036
    %v3107 = vpack.c.b16 %v3039, %v3037
    %v3108 = vpack.c.b16 %v3042, %v3040
    %v3109 = vpack.c.b16 %v3043, %v3041
    %v3110 = vpack.c.b16 %v3046, %v3044
    %v3111 = vpack.c.b16 %v3047, %v3045
    %3176 = vmatprep.subr.bf16.mxu0 %v3049
    %3177 = vmatpush1.bf16.msra.mxu0 %v3048
    %3178 = vmatprep.subr.bf16.mxu0 %v3051
    %3179 = vmatpush1.bf16.msra.mxu0 %v3050
    %3180 = vmatprep.subr.bf16.mxu0 %v3053
    %3181 = vmatpush1.bf16.msra.mxu0 %v3052
    %3182 = vmatprep.subr.bf16.mxu0 %v3055
    %3183 = vmatpush1.bf16.msra.mxu0 %v3054
    %3184 = vmatprep.subr.bf16.mxu0 %v3057
    %3185 = vmatpush1.bf16.msra.mxu0 %v3056
    %3186 = vmatprep.subr.bf16.mxu0 %v3059
    %3187 = vmatpush1.bf16.msra.mxu0 %v3058
    %3188 = vmatprep.subr.bf16.mxu0 %v3061
    %3189 = vmatpush1.bf16.msra.mxu0 %v3060
    %3190 = vmatprep.subr.bf16.mxu0 %v3063
    %3191 = vmatpush1.bf16.msra.mxu0 %v3062
    %3192 = vmatprep.subr.bf16.mxu0 %v3065
    %3193 = vmatpush1.bf16.msra.mxu0 %v3064
    %3194 = vmatprep.subr.bf16.mxu0 %v3067
    %3195 = vmatpush1.bf16.msra.mxu0 %v3066
    %3196 = vmatprep.subr.bf16.mxu0 %v3069
    %3197 = vmatpush1.bf16.msra.mxu0 %v3068
    %3198 = vmatprep.subr.bf16.mxu0 %v3071
    %3199 = vmatpush1.bf16.msra.mxu0 %v3070
    %3200 = vmatprep.subr.bf16.mxu0 %v3073
    %3201 = vmatpush1.bf16.msra.mxu0 %v3072
    %3202 = vmatprep.subr.bf16.mxu0 %v3075
    %3203 = vmatpush1.bf16.msra.mxu0 %v3074
    %3204 = vmatprep.subr.bf16.mxu0 %v3077
    %3205 = vmatpush1.bf16.msra.mxu0 %v3076
    %3206 = vmatprep.subr.bf16.mxu0 %v3079
    %3207 = vmatpush1.bf16.msra.mxu0 %v3078
    %3208 = vmatprep.mubr.bf16.mxu0 %v2777
    %3209 = vmatmul.mubr.bf16.gmra.mrb[0].mxu0 %v2776
    %v3210 = vpop.f32.mrb[0].mxu0
    %v3211 = vadd.f32 %v2849, %v3210
    %v3212 = vpop.f32.mrb[0].mxu0
    %v3213 = vadd.f32 %v2853, %v3212
    %v3214 = vpop.f32.mrb[0].mxu0
    %v3215 = vpop.f32.mrb[0].mxu0
    %3216 = vdwg.mxu0
    %3217 = vmatprep.subr.bf16.mxu0 %v3081
    %3218 = vmatpush1.bf16.msra.mxu0 %v3080
    %3219 = vmatprep.subr.bf16.mxu0 %v3083
    %3220 = vmatpush1.bf16.msra.mxu0 %v3082
    %3221 = vmatprep.subr.bf16.mxu0 %v3085
    %3222 = vmatpush1.bf16.msra.mxu0 %v3084
    %3223 = vmatprep.subr.bf16.mxu0 %v3087
    %3224 = vmatpush1.bf16.msra.mxu0 %v3086
    %3225 = vmatprep.subr.bf16.mxu0 %v3089
    %3226 = vmatpush1.bf16.msra.mxu0 %v3088
    %3227 = vmatprep.subr.bf16.mxu0 %v3091
    %3228 = vmatpush1.bf16.msra.mxu0 %v3090
    %3229 = vmatprep.subr.bf16.mxu0 %v3093
    %3230 = vmatpush1.bf16.msra.mxu0 %v3092
    %3231 = vmatprep.subr.bf16.mxu0 %v3095
    %3232 = vmatpush1.bf16.msra.mxu0 %v3094
    %3233 = vmatprep.subr.bf16.mxu0 %v3097
    %3234 = vmatpush1.bf16.msra.mxu0 %v3096
    %3235 = vmatprep.subr.bf16.mxu0 %v3099
    %3236 = vmatpush1.bf16.msra.mxu0 %v3098
    %3237 = vmatprep.subr.bf16.mxu0 %v3101
    %3238 = vmatpush1.bf16.msra.mxu0 %v3100
    %3239 = vmatprep.subr.bf16.mxu0 %v3103
    %3240 = vmatpush1.bf16.msra.mxu0 %v3102
    %3241 = vmatprep.subr.bf16.mxu0 %v3105
    %3242 = vmatpush1.bf16.msra.mxu0 %v3104
    %3243 = vmatprep.subr.bf16.mxu0 %v3107
    %3244 = vmatpush1.bf16.msra.mxu0 %v3106
    %3245 = vmatprep.subr.bf16.mxu0 %v3109
    %3246 = vmatpush1.bf16.msra.mxu0 %v3108
    %3247 = vmatprep.subr.bf16.mxu0 %v3111
    %3248 = vmatpush1.bf16.msra.mxu0 %v3110
    %3249 = vmatprep.mubr.bf16.mxu0 %v2779
    %3250 = vmatmul.mubr.bf16.gmra.mrb[0].mxu0 %v2778
    %v3251 = vpop.f32.mrb[0].mxu0
    %v3252 = vadd.f32 %v3211, %v3251
    %v3253 = vpop.f32.mrb[0].mxu0
    %v3254 = vadd.f32 %v3213, %v3253
    %v3255 = vpop.f32.mrb[0].mxu0
    %v3256 = vpop.f32.mrb[0].mxu0
    %3257 = vdwg.mxu0
    %v3258 = vmax.f32 %v3252, 0.0
    %v3259 = vmax.f32 %v3254, 0.0
    %v3260 = vpack.c.bf16 %v3258, %v3258
    %v3261 = vpack.c.bf16 %v3259, %v3259
    %v3262 = vld [vmem:[%s7] sm:$0xf]
    %v3263 = vld [vmem:[%s7 + $0x4] sm:$0xf]
    %v3264 = vld [vmem:[%s7 + $0x8] sm:$0xf]
    %v3265 = vld [vmem:[%s7 + $0xc] sm:$0xf]
    %v3266 = vld [vmem:[%s7 + $0x10] sm:$0xf]
    %v3267 = vld [vmem:[%s7 + $0x14] sm:$0xf]
    %v3268 = vld [vmem:[%s7 + $0x18] sm:$0xf]
    %v3269 = vld [vmem:[%s7 + $0x1c] sm:$0xf]
    %v3270 = vld [vmem:[%s7 + $0x20] sm:$0xf]
    %v3271 = vld [vmem:[%s7 + $0x24] sm:$0xf]
    %v3272 = vld [vmem:[%s7 + $0x28] sm:$0xf]
    %v3273 = vld [vmem:[%s7 + $0x2c] sm:$0xf]
    %v3274 = vld [vmem:[%s7 + $0x30] sm:$0xf]
    %v3275 = vld [vmem:[%s7 + $0x34] sm:$0xf]
    %v3276 = vld [vmem:[%s7 + $0x38] sm:$0xf]
    %v3277 = vld [vmem:[%s7 + $0x3c] sm:$0xf]
    %v3278 = vld [vmem:[%s7 + $0x40] sm:$0xf]
    %v3279 = vld [vmem:[%s7 + $0x44] sm:$0xf]
    %v3280 = vld [vmem:[%s7 + $0x48] sm:$0xf]
    %v3281 = vld [vmem:[%s7 + $0x4c] sm:$0xf]
    %v3282 = vld [vmem:[%s7 + $0x50] sm:$0xf]
    %v3283 = vld [vmem:[%s7 + $0x54] sm:$0xf]
    %v3284 = vld [vmem:[%s7 + $0x58] sm:$0xf]
    %v3285 = vld [vmem:[%s7 + $0x5c] sm:$0xf]
    %v3286 = vld [vmem:[%s7 + $0x60] sm:$0xf]
    %v3287 = vld [vmem:[%s7 + $0x64] sm:$0xf]
    %v3288 = vld [vmem:[%s7 + $0x68] sm:$0xf]
    %v3289 = vld [vmem:[%s7 + $0x6c] sm:$0xf]
    %v3290 = vld [vmem:[%s7 + $0x70] sm:$0xf]
    %v3291 = vld [vmem:[%s7 + $0x74] sm:$0xf]
    %v3292 = vld [vmem:[%s7 + $0x78] sm:$0xf]
    %v3293 = vld [vmem:[%s7 + $0x7c] sm:$0xf]
    %v3294 = vld [vmem:[%s8] sm:$0x1]
    %v3296 = vlaneseq
    %v3297 = vshrl.u32 %v3296, 7
    %v3298 = vsub.s32 0, %v3297
    %v3299 = vrot.slane %v3294, %v3298
    %v3333 = vunpack.c.l.b16 %v3262
    %v3334 = vunpack.c.l.b16 %v3263
    %v3335 = vunpack.c.l.b16 %v3264
    %v3336 = vunpack.c.l.b16 %v3265
    %v3337 = vunpack.c.l.b16 %v3266
    %v3338 = vunpack.c.l.b16 %v3267
    %v3339 = vunpack.c.l.b16 %v3268
    %v3340 = vunpack.c.l.b16 %v3269
    %v3341 = vunpack.c.l.b16 %v3270
    %v3342 = vunpack.c.l.b16 %v3271
    %v3343 = vunpack.c.l.b16 %v3272
    %v3344 = vunpack.c.l.b16 %v3273
    %v3345 = vunpack.c.l.b16 %v3274
    %v3346 = vunpack.c.l.b16 %v3275
    %v3347 = vunpack.c.l.b16 %v3276
    %v3348 = vunpack.c.l.b16 %v3277
    %v3349 = vunpack.c.l.b16 %v3278
    %v3350 = vunpack.c.l.b16 %v3279
    %v3351 = vunpack.c.l.b16 %v3280
    %v3352 = vunpack.c.l.b16 %v3281
    %v3353 = vunpack.c.l.b16 %v3282
    %v3354 = vunpack.c.l.b16 %v3283
    %v3355 = vunpack.c.l.b16 %v3284
    %v3356 = vunpack.c.l.b16 %v3285
    %v3357 = vunpack.c.l.b16 %v3286
    %v3358 = vunpack.c.l.b16 %v3287
    %v3359 = vunpack.c.l.b16 %v3288
    %v3360 = vunpack.c.l.b16 %v3289
    %v3361 = vunpack.c.l.b16 %v3290
    %v3362 = vunpack.c.l.b16 %v3291
    %v3363 = vunpack.c.l.b16 %v3292
    %v3364 = vunpack.c.l.b16 %v3293
    %v3365 = vpack.c.b16 %v3334, %v3333
    %v3366 = vpack.c.b16 %v3336, %v3335
    %v3367 = vpack.c.b16 %v3338, %v3337
    %v3368 = vpack.c.b16 %v3340, %v3339
    %v3369 = vpack.c.b16 %v3342, %v3341
    %v3370 = vpack.c.b16 %v3344, %v3343
    %v3371 = vpack.c.b16 %v3346, %v3345
    %v3372 = vpack.c.b16 %v3348, %v3347
    %v3373 = vpack.c.b16 %v3350, %v3349
    %v3374 = vpack.c.b16 %v3352, %v3351
    %v3375 = vpack.c.b16 %v3354, %v3353
    %v3376 = vpack.c.b16 %v3356, %v3355
    %v3377 = vpack.c.b16 %v3358, %v3357
    %v3378 = vpack.c.b16 %v3360, %v3359
    %v3379 = vpack.c.b16 %v3362, %v3361
    %v3380 = vpack.c.b16 %v3364, %v3363
    %3397 = vmatprep.subr.bf16.mxu0 0
    %3398 = vmatpush1.bf16.msra.mxu0 %v3365
    %3399 = vmatprep.subr.bf16.mxu0 0
    %3400 = vmatpush1.bf16.msra.mxu0 %v3366
    %3401 = vmatprep.subr.bf16.mxu0 0
    %3402 = vmatpush1.bf16.msra.mxu0 %v3367
    %3403 = vmatprep.subr.bf16.mxu0 0
    %3404 = vmatpush1.bf16.msra.mxu0 %v3368
    %3405 = vmatprep.subr.bf16.mxu0 0
    %3406 = vmatpush1.bf16.msra.mxu0 %v3369
    %3407 = vmatprep.subr.bf16.mxu0 0
    %3408 = vmatpush1.bf16.msra.mxu0 %v3370
    %3409 = vmatprep.subr.bf16.mxu0 0
    %3410 = vmatpush1.bf16.msra.mxu0 %v3371
    %3411 = vmatprep.subr.bf16.mxu0 0
    %3412 = vmatpush1.bf16.msra.mxu0 %v3372
    %3413 = vmatprep.subr.bf16.mxu0 0
    %3414 = vmatpush1.bf16.msra.mxu0 %v3373
    %3415 = vmatprep.subr.bf16.mxu0 0
    %3416 = vmatpush1.bf16.msra.mxu0 %v3374
    %3417 = vmatprep.subr.bf16.mxu0 0
    %3418 = vmatpush1.bf16.msra.mxu0 %v3375
    %3419 = vmatprep.subr.bf16.mxu0 0
    %3420 = vmatpush1.bf16.msra.mxu0 %v3376
    %3421 = vmatprep.subr.bf16.mxu0 0
    %3422 = vmatpush1.bf16.msra.mxu0 %v3377
    %3423 = vmatprep.subr.bf16.mxu0 0
    %3424 = vmatpush1.bf16.msra.mxu0 %v3378
    %3425 = vmatprep.subr.bf16.mxu0 0
    %3426 = vmatpush1.bf16.msra.mxu0 %v3379
    %3427 = vmatprep.subr.bf16.mxu0 0
    %3428 = vmatpush1.bf16.msra.mxu0 %v3380
    %3429 = vmatprep.mubr.bf16.mxu0 %v3261
    %3430 = vmatmul.mubr.bf16.gmra.mrb[0].mxu0 %v3260
    %v3431 = vpop.f32.mrb[0].mxu0
    %v3432 = vadd.f32 %v3299, %v3431
    %v3433 = vpop.f32.mrb[0].mxu0
    %v3434 = vpop.f32.mrb[0].mxu0
    %v3435 = vpop.f32.mrb[0].mxu0
    %3436 = vdwg.mxu0
    %v3437 = vmax.f32 %v3432, 0.0
    %v3438 = vpack.c.bf16 %v3437, %v3437
    %v3439 = vld [vmem:[%s9] sm:$0xf]
    %v3440 = vld [vmem:[%s9 + $0x4] sm:$0xf]
    %v3441 = vld [vmem:[%s9 + $0x8] sm:$0xf]
    %v3442 = vld [vmem:[%s9 + $0xc] sm:$0xf]
    %v3443 = vld [vmem:[%s9 + $0x10] sm:$0xf]
    %v3444 = vld [vmem:[%s9 + $0x14] sm:$0xf]
    %v3445 = vld [vmem:[%s9 + $0x18] sm:$0xf]
    %v3446 = vld [vmem:[%s9 + $0x1c] sm:$0xf]
    %v3447 = vld [vmem:[%s9 + $0x20] sm:$0xf]
    %v3448 = vld [vmem:[%s9 + $0x24] sm:$0xf]
    %v3449 = vld [vmem:[%s9 + $0x28] sm:$0xf]
    %v3450 = vld [vmem:[%s9 + $0x2c] sm:$0xf]
    %v3451 = vld [vmem:[%s9 + $0x30] sm:$0xf]
    %v3452 = vld [vmem:[%s9 + $0x34] sm:$0xf]
    %v3453 = vld [vmem:[%s9 + $0x38] sm:$0xf]
    %v3454 = vld [vmem:[%s9 + $0x3c] sm:$0xf]
    %v3455 = vld [vmem:[%s10] sm:$0x1]
    %v3457 = vlaneseq
    %v3458 = vshrl.u32 %v3457, 7
    %v3459 = vsub.s32 0, %v3458
    %v3460 = vrot.slane %v3455, %v3459
    %v3478 = vunpack.c.l.b16 %v3439
    %v3479 = vunpack.c.l.b16 %v3440
    %v3480 = vunpack.c.l.b16 %v3441
    %v3481 = vunpack.c.l.b16 %v3442
    %v3482 = vunpack.c.l.b16 %v3443
    %v3483 = vunpack.c.l.b16 %v3444
    %v3484 = vunpack.c.l.b16 %v3445
    %v3485 = vunpack.c.l.b16 %v3446
    %v3486 = vunpack.c.l.b16 %v3447
    %v3487 = vunpack.c.l.b16 %v3448
    %v3488 = vunpack.c.l.b16 %v3449
    %v3489 = vunpack.c.l.b16 %v3450
    %v3490 = vunpack.c.l.b16 %v3451
    %v3491 = vunpack.c.l.b16 %v3452
    %v3492 = vunpack.c.l.b16 %v3453
    %v3493 = vunpack.c.l.b16 %v3454
    %v3494 = vpack.c.b16 %v3479, %v3478
    %v3495 = vpack.c.b16 %v3481, %v3480
    %v3496 = vpack.c.b16 %v3483, %v3482
    %v3497 = vpack.c.b16 %v3485, %v3484
    %v3498 = vpack.c.b16 %v3487, %v3486
    %v3499 = vpack.c.b16 %v3489, %v3488
    %v3500 = vpack.c.b16 %v3491, %v3490
    %v3501 = vpack.c.b16 %v3493, %v3492
    %3510 = vmatprep.subr.bf16.mxu0 0
    %3511 = vmatpush1.bf16.msra.mxu0 %v3494
    %3512 = vmatprep.subr.bf16.mxu0 0
    %3513 = vmatpush1.bf16.msra.mxu0 %v3495
    %3514 = vmatprep.subr.bf16.mxu0 0
    %3515 = vmatpush1.bf16.msra.mxu0 %v3496
    %3516 = vmatprep.subr.bf16.mxu0 0
    %3517 = vmatpush1.bf16.msra.mxu0 %v3497
    %3518 = vmatprep.subr.bf16.mxu0 0
    %3519 = vmatpush1.bf16.msra.mxu0 %v3498
    %3520 = vmatprep.subr.bf16.mxu0 0
    %3521 = vmatpush1.bf16.msra.mxu0 %v3499
    %3522 = vmatprep.subr.bf16.mxu0 0
    %3523 = vmatpush1.bf16.msra.mxu0 %v3500
    %3524 = vmatprep.subr.bf16.mxu0 0
    %3525 = vmatpush1.bf16.msra.mxu0 %v3501
    %3526 = vmatprep.subr.bf16.mxu0 0
    %3527 = vmatpush1.bf16.msra.mxu0 0
    %3528 = vmatprep.subr.bf16.mxu0 0
    %3529 = vmatpush1.bf16.msra.mxu0 0
    %3530 = vmatprep.subr.bf16.mxu0 0
    %3531 = vmatpush1.bf16.msra.mxu0 0
    %3532 = vmatprep.subr.bf16.mxu0 0
    %3533 = vmatpush1.bf16.msra.mxu0 0
    %3534 = vmatprep.subr.bf16.mxu0 0
    %3535 = vmatpush1.bf16.msra.mxu0 0
    %3536 = vmatprep.subr.bf16.mxu0 0
    %3537 = vmatpush1.bf16.msra.mxu0 0
    %3538 = vmatprep.subr.bf16.mxu0 0
    %3539 = vmatpush1.bf16.msra.mxu0 0
    %3540 = vmatprep.subr.bf16.mxu0 0
    %3541 = vmatpush1.bf16.msra.mxu0 0
    %3542 = vmatprep.mubr.bf16.mxu0 0
    %3543 = vmatmul.mubr.bf16.gmra.mrb[0].mxu0 %v3438
    %v3544 = vpop.f32.mrb[0].mxu0
    %v3545 = vadd.f32 %v3460, %v3544
    %v3546 = vpop.f32.mrb[0].mxu0
    %v3547 = vpop.f32.mrb[0].mxu0
    %v3548 = vpop.f32.mrb[0].mxu0
    %3549 = vdwg.mxu0
    %3550 = vst [vmem:[%s11] sm:$0xff] %v3545
    // Predicated region
    $region58: #{dqn_forward.1} parent=1 // pred_check
      _
    $region59: #{dqn_forward.1} parent=1 // pred_check_branch
      %3552 = sbr.rel (0) target = $region61
    $region60: #{dqn_forward.1} parent=1 // pred_region
      _
    $region61: #{dqn_forward.1} parent=1 // pred_fallthru
      _
    // Predicated region
    $region62: #{dqn_forward.1} parent=1 // pred_check
      _
    $region63: #{dqn_forward.1} parent=1 // pred_check_branch
      %3554 = sbr.rel (0) target = $region65
    $region64: #{dqn_forward.1} parent=1 // pred_region
      _
    $region65: #{dqn_forward.1} parent=1 // pred_fallthru
      _
    %3555 = vsyncpa [#allocation3], 1
    %3556 = vsyncpa [#allocation5], 1

</llo_original>
